<compile_context>
chip_gen: v7x
topology: tpu7x:2x2x1
jax: 0.10.0
libtpu: 0.0.40
codegen_flags: <defaults>
</compile_context>

<pallas_src>
import functools

import jax
import jax.numpy as jnp
from jax.experimental import pallas as pl
from jax.experimental.pallas import tpu as pltpu

HIDDEN = 512
NUM_CLASSES = 3
OUT_PAD = 128            # pad logits to a full lane width; sliced to 3 outside
ACT_VMEM_BUDGET = 8 << 20  # bytes for the double-buffered activation tiles


def _round_up(x, m):
    return (x + m - 1) // m * m


def _choose_tb(B, S, D, in_itemsize=2, act_budget=ACT_VMEM_BUDGET):
    """Batch rows per grid step, sized from a VMEM budget (not a fixed 128)."""
    per_row = 2 * 2 * S * D * in_itemsize      # 2 inputs x 2 pipeline buffers
    tb = max(8, min(1024, (act_budget // max(per_row, 1)) // 8 * 8))
    # Give megacore (v7x) at least 2 grid steps when the batch allows it.
    if B >= 16:
        tb = min(tb, max(8, _round_up((B + 1) // 2, 8)))
    if B <= tb:
        tb = B   # single full-extent block: no ragged tail, no padding needed
    return tb


def nli_kernel(p_ref, h_ref, w1u_ref, w1v_ref, w1d_ref, w1p_ref, b1_ref,
               w2_ref, b2_ref, w3_ref, b3_ref, o_ref, *, inv_seq_len):
    f32 = jnp.float32
    bf16 = jnp.bfloat16

    # "encoder": mean-pool over the sequence axis -> (tb, D).
    # bf16 inputs, f32 accumulation; divide replaced by compile-time reciprocal.
    u = jnp.sum(p_ref[...].astype(f32), axis=1) * inv_seq_len
    v = jnp.sum(h_ref[...].astype(f32), axis=1) * inv_seq_len

    # Feature vector [u, v, |u-v|, u*v]: never materialized.  The first Linear
    # is evaluated as four partial matmuls over the pre-split W1 (same math,
    # no concatenate relayout, no scratch round-trip).
    ub = u.astype(bf16)
    vb = v.astype(bf16)
    db = jnp.abs(u - v).astype(bf16)
    pb = (u * v).astype(bf16)

    h1 = (jnp.dot(ub, w1u_ref[...], preferred_element_type=f32)
          + jnp.dot(vb, w1v_ref[...], preferred_element_type=f32)
          + jnp.dot(db, w1d_ref[...], preferred_element_type=f32)
          + jnp.dot(pb, w1p_ref[...], preferred_element_type=f32)
          + b1_ref[...])
    h2 = jnp.dot(h1.astype(bf16), w2_ref[...],
                 preferred_element_type=f32) + b2_ref[...]
    out = jnp.dot(h2.astype(bf16), w3_ref[...],
                  preferred_element_type=f32) + b3_ref[...]
    o_ref[...] = out.astype(o_ref.dtype)   # bf16 logits, lane-dense store


def neural_net_forward(premise, hypothesis, kparams):
    """premise/hypothesis: (B, S, D); bf16 preferred (cast once if not)."""
    B, S, D = premise.shape
    if premise.dtype != jnp.bfloat16:
        # Ideally the caller provides bf16; this is a one-time fallback cast.
        premise = premise.astype(jnp.bfloat16)
        hypothesis = hypothesis.astype(jnp.bfloat16)

    w1u, w1v, w1d, w1p, b1, w2, b2, w3, b3 = kparams

    tb = _choose_tb(B, S, D)
    grid = (pl.cdiv(B, tb),)

    # VMEM footprint -> explicit limit (v5e's default scoped limit is 16 MiB).
    weight_bytes = ((4 * D * HIDDEN + HIDDEN * HIDDEN + HIDDEN * OUT_PAD) * 2
                    + (2 * HIDDEN + OUT_PAD) * 4)
    act_bytes = 2 * 2 * tb * S * D * 2          # 2 inputs x 2 buffers, bf16
    out_bytes = 2 * tb * OUT_PAD * 2            # 2 buffers, bf16 logits
    vmem_limit = int(min(max(2 * weight_bytes + act_bytes + out_bytes
                             + (2 << 20), 8 << 20), 48 << 20))

    flops = 2 * B * (4 * D * HIDDEN + HIDDEN * HIDDEN + HIDDEN * OUT_PAD)
    bytes_accessed = (2 * B * S * D * 2          # bf16 activations in
                      + weight_bytes             # resident weights/biases
                      + B * OUT_PAD * 2)         # bf16 logits out

    kernel = functools.partial(nli_kernel, inv_seq_len=1.0 / S)

    def resident(arr):
        # Full-array block with a constant index map: stays resident in VMEM,
        # no re-DMA per grid step.
        return pl.BlockSpec(arr.shape, lambda i, _n=arr.ndim: (0,) * _n)

    out = pl.pallas_call(
        kernel,
        out_shape=jax.ShapeDtypeStruct((B, OUT_PAD), jnp.bfloat16),
        grid=grid,
        in_specs=[
            pl.BlockSpec((tb, S, D), lambda i: (i, 0, 0)),   # premise tile
            pl.BlockSpec((tb, S, D), lambda i: (i, 0, 0)),   # hypothesis tile
            resident(w1u), resident(w1v), resident(w1d), resident(w1p),
            resident(b1), resident(w2), resident(b2), resident(w3),
            resident(b3),
        ],
        out_specs=pl.BlockSpec((tb, OUT_PAD), lambda i: (i, 0)),
        compiler_params=pltpu.CompilerParams(
            dimension_semantics=("parallel",),
            vmem_limit_bytes=vmem_limit),
        cost_estimate=pl.CostEstimate(
            flops=flops, transcendentals=0, bytes_accessed=bytes_accessed),
    )(premise, hypothesis, w1u, w1v, w1d, w1p, b1, w2, b2, w3, b3)

    return out[:, :NUM_CLASSES].astype(jnp.float32)


def init_params(key, input_dim):
    """Deterministic synthetic init. f32 masters, weights as (in, out)."""
    ks = jax.random.split(key, 6)
    feat_dim = 4 * input_dim

    def lin(kw, kb, fan_in, fan_out):
        bound = 1.0 / jnp.sqrt(fan_in)
        w = jax.random.uniform(kw, (fan_in, fan_out), jnp.float32, -bound, bound)
        b = jax.random.uniform(kb, (1, fan_out), jnp.float32, -bound, bound)
        return w, b

    w1, b1 = lin(ks[0], ks[1], feat_dim, HIDDEN)
    w2, b2 = lin(ks[2], ks[3], HIDDEN, HIDDEN)
    w3, b3 = lin(ks[4], ks[5], HIDDEN, NUM_CLASSES)
    return (w1, b1, w2, b2, w3, b3)


def prepare_kernel_params(params, input_dim):
    """One-time bf16 cast + W1 split + W3 lane padding (not per forward call)."""
    w1, b1, w2, b2, w3, b3 = params
    D = input_dim
    bf = jnp.bfloat16
    w1b = w1.astype(bf)
    w1u = w1b[0 * D:1 * D]
    w1v = w1b[1 * D:2 * D]
    w1d = w1b[2 * D:3 * D]
    w1p = w1b[3 * D:4 * D]
    w3p = jnp.zeros((HIDDEN, OUT_PAD), bf).at[:, :NUM_CLASSES].set(w3.astype(bf))
    b3p = jnp.zeros((1, OUT_PAD), jnp.float32).at[:, :NUM_CLASSES].set(b3)
    return (w1u, w1v, w1d, w1p, b1, w2.astype(bf), b2, w3p, b3p)


def reference_forward(premise, hypothesis, params):
    """Pure-JAX reference mirroring the kernel's bf16-at-dot-input casts."""
    w1, b1, w2, b2, w3, b3 = params
    bf = jnp.bfloat16
    f32 = jnp.float32
    u = jnp.mean(premise.astype(f32), axis=1)
    v = jnp.mean(hypothesis.astype(f32), axis=1)
    feat = jnp.concatenate([u, v, jnp.abs(u - v), u * v], axis=1)
    h1 = jnp.dot(feat.astype(bf), w1.astype(bf),
                 preferred_element_type=f32) + b1
    h2 = jnp.dot(h1.astype(bf), w2.astype(bf),
                 preferred_element_type=f32) + b2
    out = jnp.dot(h2.astype(bf), w3.astype(bf),
                  preferred_element_type=f32) + b3
    return out


if __name__ == "__main__":
    B, S, D = 2, 8, 32   # small shapes: batch=2, seq=8, encoder dim=32
    key = jax.random.PRNGKey(0)
    kp, kh, kw = jax.random.split(key, 3)
    premise = jax.random.normal(kp, (B, S, D), jnp.float32).astype(jnp.bfloat16)
    hypothesis = jax.random.normal(kh, (B, S, D), jnp.float32).astype(jnp.bfloat16)

    params = init_params(kw, D)                       # f32 masters
    kparams = prepare_kernel_params(params, D)        # one-time bf16 prep
    kparams = jax.block_until_ready(kparams)

    out = neural_net_forward(premise, hypothesis, kparams)
    out = jax.block_until_ready(out)

    ref = reference_forward(premise, hypothesis, params)
    assert out.shape == (B, NUM_CLASSES), out.shape
    assert jnp.allclose(out, ref, atol=3e-2, rtol=3e-2), (out, ref)
    print("KERNEL_OK")
</pallas_src>

<mosaic_0001>
module attributes {stable_mosaic.version = 11 : i64} {
  func.func @nli_kernel(%arg0: i32, %arg1: memref<2x8x32xbf16, #tpu.memory_space<vmem>>, %arg2: memref<2x8x32xbf16, #tpu.memory_space<vmem>>, %arg3: memref<32x512xbf16, #tpu.memory_space<vmem>>, %arg4: memref<32x512xbf16, #tpu.memory_space<vmem>>, %arg5: memref<32x512xbf16, #tpu.memory_space<vmem>>, %arg6: memref<32x512xbf16, #tpu.memory_space<vmem>>, %arg7: memref<1x512xf32, #tpu.memory_space<vmem>>, %arg8: memref<512x512xbf16, #tpu.memory_space<vmem>>, %arg9: memref<1x512xf32, #tpu.memory_space<vmem>>, %arg10: memref<512x128xbf16, #tpu.memory_space<vmem>>, %arg11: memref<1x128xf32, #tpu.memory_space<vmem>>, %arg12: memref<2x128xbf16, #tpu.memory_space<vmem>>) attributes {dimension_semantics = [#tpu.dimension_semantics<parallel>], iteration_bounds = array<i64: 1>, scalar_prefetch = 0 : i64, scratch_operands = 0 : i64, tpu.core_type = #tpu.core_type<tc>, window_params = [{transform_indices = @transform_0, window_bounds = array<i64: 2, 8, 32>}, {transform_indices = @transform_1, window_bounds = array<i64: 2, 8, 32>}, {pipeline_mode = #tpu.pipeline_mode<synchronous>, transform_indices = @transform_2, window_bounds = array<i64: 32, 512>}, {pipeline_mode = #tpu.pipeline_mode<synchronous>, transform_indices = @transform_3, window_bounds = array<i64: 32, 512>}, {pipeline_mode = #tpu.pipeline_mode<synchronous>, transform_indices = @transform_4, window_bounds = array<i64: 32, 512>}, {pipeline_mode = #tpu.pipeline_mode<synchronous>, transform_indices = @transform_5, window_bounds = array<i64: 32, 512>}, {pipeline_mode = #tpu.pipeline_mode<synchronous>, transform_indices = @transform_6, window_bounds = array<i64: 1, 512>}, {pipeline_mode = #tpu.pipeline_mode<synchronous>, transform_indices = @transform_7, window_bounds = array<i64: 512, 512>}, {pipeline_mode = #tpu.pipeline_mode<synchronous>, transform_indices = @transform_8, window_bounds = array<i64: 1, 512>}, {pipeline_mode = #tpu.pipeline_mode<synchronous>, transform_indices = @transform_9, window_bounds = array<i64: 512, 128>}, {pipeline_mode = #tpu.pipeline_mode<synchronous>, transform_indices = @transform_10, window_bounds = array<i64: 1, 128>}, {transform_indices = @transform_11, window_bounds = array<i64: 2, 128>}]} {
    %c0 = arith.constant 0 : index
    %c0_0 = arith.constant 0 : index
    %c0_1 = arith.constant 0 : index
    %0 = vector.load %arg1[%c0, %c0_0, %c0_1] : memref<2x8x32xbf16, #tpu.memory_space<vmem>>, vector<2x8x32xbf16>
    %1 = arith.extf %0 : vector<2x8x32xbf16> to vector<2x8x32xf32>
    %cst = arith.constant dense<0.000000e+00> : vector<2x32xf32>
    %2 = vector.multi_reduction <add>, %1, %cst [1] : vector<2x8x32xf32> to vector<2x32xf32>
    %cst_2 = arith.constant 1.250000e-01 : f32
    %3 = vector.broadcast %cst_2 : f32 to vector<2x32xf32>
    %4 = arith.mulf %2, %3 : vector<2x32xf32>
    %c0_3 = arith.constant 0 : index
    %c0_4 = arith.constant 0 : index
    %c0_5 = arith.constant 0 : index
    %5 = vector.load %arg2[%c0_3, %c0_4, %c0_5] : memref<2x8x32xbf16, #tpu.memory_space<vmem>>, vector<2x8x32xbf16>
    %6 = arith.extf %5 : vector<2x8x32xbf16> to vector<2x8x32xf32>
    %cst_6 = arith.constant dense<0.000000e+00> : vector<2x32xf32>
    %7 = vector.multi_reduction <add>, %6, %cst_6 [1] : vector<2x8x32xf32> to vector<2x32xf32>
    %cst_7 = arith.constant 1.250000e-01 : f32
    %8 = vector.broadcast %cst_7 : f32 to vector<2x32xf32>
    %9 = arith.mulf %7, %8 : vector<2x32xf32>
    %10 = arith.truncf %4 : vector<2x32xf32> to vector<2x32xbf16>
    %11 = arith.truncf %9 : vector<2x32xf32> to vector<2x32xbf16>
    %12 = arith.subf %4, %9 : vector<2x32xf32>
    %13 = math.absf %12 : vector<2x32xf32>
    %14 = arith.truncf %13 : vector<2x32xf32> to vector<2x32xbf16>
    %15 = arith.mulf %4, %9 : vector<2x32xf32>
    %16 = arith.truncf %15 : vector<2x32xf32> to vector<2x32xbf16>
    %c0_8 = arith.constant 0 : index
    %c0_9 = arith.constant 0 : index
    %17 = vector.load %arg3[%c0_8, %c0_9] : memref<32x512xbf16, #tpu.memory_space<vmem>>, vector<32x512xbf16>
    %cst_10 = arith.constant dense<0.000000e+00> : vector<2x512xf32>
    %18 = tpu.matmul %10, %17, %cst_10 {dimension_numbers = #tpu.dot_dimension_numbers<[1], [0], [0], [1], [0, 0, 1, 1], [], []>} : vector<2x32xbf16>, vector<32x512xbf16>, vector<2x512xf32> -> vector<2x512xf32>
    %c0_11 = arith.constant 0 : index
    %c0_12 = arith.constant 0 : index
    %19 = vector.load %arg4[%c0_11, %c0_12] : memref<32x512xbf16, #tpu.memory_space<vmem>>, vector<32x512xbf16>
    %cst_13 = arith.constant dense<0.000000e+00> : vector<2x512xf32>
    %20 = tpu.matmul %11, %19, %cst_13 {dimension_numbers = #tpu.dot_dimension_numbers<[1], [0], [0], [1], [0, 0, 1, 1], [], []>} : vector<2x32xbf16>, vector<32x512xbf16>, vector<2x512xf32> -> vector<2x512xf32>
    %21 = arith.addf %18, %20 : vector<2x512xf32>
    %c0_14 = arith.constant 0 : index
    %c0_15 = arith.constant 0 : index
    %22 = vector.load %arg5[%c0_14, %c0_15] : memref<32x512xbf16, #tpu.memory_space<vmem>>, vector<32x512xbf16>
    %cst_16 = arith.constant dense<0.000000e+00> : vector<2x512xf32>
    %23 = tpu.matmul %14, %22, %cst_16 {dimension_numbers = #tpu.dot_dimension_numbers<[1], [0], [0], [1], [0, 0, 1, 1], [], []>} : vector<2x32xbf16>, vector<32x512xbf16>, vector<2x512xf32> -> vector<2x512xf32>
    %24 = arith.addf %21, %23 : vector<2x512xf32>
    %c0_17 = arith.constant 0 : index
    %c0_18 = arith.constant 0 : index
    %25 = vector.load %arg6[%c0_17, %c0_18] : memref<32x512xbf16, #tpu.memory_space<vmem>>, vector<32x512xbf16>
    %cst_19 = arith.constant dense<0.000000e+00> : vector<2x512xf32>
    %26 = tpu.matmul %16, %25, %cst_19 {dimension_numbers = #tpu.dot_dimension_numbers<[1], [0], [0], [1], [0, 0, 1, 1], [], []>} : vector<2x32xbf16>, vector<32x512xbf16>, vector<2x512xf32> -> vector<2x512xf32>
    %27 = arith.addf %24, %26 : vector<2x512xf32>
    %c0_20 = arith.constant 0 : index
    %c0_21 = arith.constant 0 : index
    %28 = vector.load %arg7[%c0_20, %c0_21] : memref<1x512xf32, #tpu.memory_space<vmem>>, vector<1x512xf32>
    %29 = vector.broadcast %28 : vector<1x512xf32> to vector<2x512xf32>
    %30 = arith.addf %27, %29 : vector<2x512xf32>
    %31 = arith.truncf %30 : vector<2x512xf32> to vector<2x512xbf16>
    %c0_22 = arith.constant 0 : index
    %c0_23 = arith.constant 0 : index
    %32 = vector.load %arg8[%c0_22, %c0_23] : memref<512x512xbf16, #tpu.memory_space<vmem>>, vector<512x512xbf16>
    %cst_24 = arith.constant dense<0.000000e+00> : vector<2x512xf32>
    %33 = tpu.matmul %31, %32, %cst_24 {dimension_numbers = #tpu.dot_dimension_numbers<[1], [0], [0], [1], [0, 0, 1, 1], [], []>} : vector<2x512xbf16>, vector<512x512xbf16>, vector<2x512xf32> -> vector<2x512xf32>
    %c0_25 = arith.constant 0 : index
    %c0_26 = arith.constant 0 : index
    %34 = vector.load %arg9[%c0_25, %c0_26] : memref<1x512xf32, #tpu.memory_space<vmem>>, vector<1x512xf32>
    %35 = vector.broadcast %34 : vector<1x512xf32> to vector<2x512xf32>
    %36 = arith.addf %33, %35 : vector<2x512xf32>
    %37 = arith.truncf %36 : vector<2x512xf32> to vector<2x512xbf16>
    %c0_27 = arith.constant 0 : index
    %c0_28 = arith.constant 0 : index
    %38 = vector.load %arg10[%c0_27, %c0_28] : memref<512x128xbf16, #tpu.memory_space<vmem>>, vector<512x128xbf16>
    %cst_29 = arith.constant dense<0.000000e+00> : vector<2x128xf32>
    %39 = tpu.matmul %37, %38, %cst_29 {dimension_numbers = #tpu.dot_dimension_numbers<[1], [0], [0], [1], [0, 0, 1, 1], [], []>} : vector<2x512xbf16>, vector<512x128xbf16>, vector<2x128xf32> -> vector<2x128xf32>
    %c0_30 = arith.constant 0 : index
    %c0_31 = arith.constant 0 : index
    %40 = vector.load %arg11[%c0_30, %c0_31] : memref<1x128xf32, #tpu.memory_space<vmem>>, vector<1x128xf32>
    %41 = vector.broadcast %40 : vector<1x128xf32> to vector<2x128xf32>
    %42 = arith.addf %39, %41 : vector<2x128xf32>
    %43 = arith.truncf %42 : vector<2x128xf32> to vector<2x128xbf16>
    %c0_32 = arith.constant 0 : index
    %c0_33 = arith.constant 0 : index
    %44 = vector.load %arg12[%c0_32, %c0_33] : memref<2x128xbf16, #tpu.memory_space<vmem>>, vector<2x128xbf16>
    tpu.vector_store %arg12[%c0_32, %c0_33], %43 {strides = array<i32>} : memref<2x128xbf16, #tpu.memory_space<vmem>>, vector<2x128xbf16>,
    return
  }
  func.func @transform_0(%arg0: i32) -> (i32, i32, i32) {
    %c0_i32 = arith.constant 0 : i32
    %c0_i32_0 = arith.constant 0 : i32
    %c0_i32_1 = arith.constant 0 : i32
    return %arg0, %c0_i32, %c0_i32_0 : i32, i32, i32
  }
  func.func @transform_1(%arg0: i32) -> (i32, i32, i32) {
    %c0_i32 = arith.constant 0 : i32
    %c0_i32_0 = arith.constant 0 : i32
    %c0_i32_1 = arith.constant 0 : i32
    return %arg0, %c0_i32, %c0_i32_0 : i32, i32, i32
  }
  func.func @transform_2(%arg0: i32) -> (i32, i32) {
    %c0_i32 = arith.constant 0 : i32
    %c0_i32_0 = arith.constant 0 : i32
    %c0_i32_1 = arith.constant 0 : i32
    return %c0_i32, %c0_i32_0 : i32, i32
  }
  func.func @transform_3(%arg0: i32) -> (i32, i32) {
    %c0_i32 = arith.constant 0 : i32
    %c0_i32_0 = arith.constant 0 : i32
    %c0_i32_1 = arith.constant 0 : i32
    return %c0_i32, %c0_i32_0 : i32, i32
  }
  func.func @transform_4(%arg0: i32) -> (i32, i32) {
    %c0_i32 = arith.constant 0 : i32
    %c0_i32_0 = arith.constant 0 : i32
    %c0_i32_1 = arith.constant 0 : i32
    return %c0_i32, %c0_i32_0 : i32, i32
  }
  func.func @transform_5(%arg0: i32) -> (i32, i32) {
    %c0_i32 = arith.constant 0 : i32
    %c0_i32_0 = arith.constant 0 : i32
    %c0_i32_1 = arith.constant 0 : i32
    return %c0_i32, %c0_i32_0 : i32, i32
  }
  func.func @transform_6(%arg0: i32) -> (i32, i32) {
    %c0_i32 = arith.constant 0 : i32
    %c0_i32_0 = arith.constant 0 : i32
    %c0_i32_1 = arith.constant 0 : i32
    return %c0_i32, %c0_i32_0 : i32, i32
  }
  func.func @transform_7(%arg0: i32) -> (i32, i32) {
    %c0_i32 = arith.constant 0 : i32
    %c0_i32_0 = arith.constant 0 : i32
    %c0_i32_1 = arith.constant 0 : i32
    return %c0_i32, %c0_i32_0 : i32, i32
  }
  func.func @transform_8(%arg0: i32) -> (i32, i32) {
    %c0_i32 = arith.constant 0 : i32
    %c0_i32_0 = arith.constant 0 : i32
    %c0_i32_1 = arith.constant 0 : i32
    return %c0_i32, %c0_i32_0 : i32, i32
  }
  func.func @transform_9(%arg0: i32) -> (i32, i32) {
    %c0_i32 = arith.constant 0 : i32
    %c0_i32_0 = arith.constant 0 : i32
    %c0_i32_1 = arith.constant 0 : i32
    return %c0_i32, %c0_i32_0 : i32, i32
  }
  func.func @transform_10(%arg0: i32) -> (i32, i32) {
    %c0_i32 = arith.constant 0 : i32
    %c0_i32_0 = arith.constant 0 : i32
    %c0_i32_1 = arith.constant 0 : i32
    return %c0_i32, %c0_i32_0 : i32, i32
  }
  func.func @transform_11(%arg0: i32) -> (i32, i32) {
    %c0_i32 = arith.constant 0 : i32
    %c0_i32_0 = arith.constant 0 : i32
    return %arg0, %c0_i32 : i32, i32
  }
}

</mosaic_0001>

<llo_original>
// kernel: tpu_custom_call.1
$region0: #{tpu_custom_call.1}
  #allocation0 [shape = 'u32[]', space=smem, size = 0x4, offset = 0x4, fixed_abs, tag = 'smem constant byte address 0x4 - core index']
  #allocation1 [shape = 'u32[144,128]{1,0:T(1,128)}', space=vmem, size = 0x12000, scoped, tag = 'internal scratch']
  %s0 = inlined_call_operand.hbm [shape: bf16[2,8,32], index: 0, kind: input, shape index: {}]
  %s1 = inlined_call_operand.hbm [shape: bf16[2,8,32], index: 1, kind: input, shape index: {}]
  %s2 = inlined_call_operand.hbm [shape: bf16[32,512], index: 2, kind: input, shape index: {}]
  %s3 = inlined_call_operand.hbm [shape: bf16[32,512], index: 3, kind: input, shape index: {}]
  %s4 = inlined_call_operand.hbm [shape: bf16[32,512], index: 4, kind: input, shape index: {}]
  %s5 = inlined_call_operand.hbm [shape: bf16[32,512], index: 5, kind: input, shape index: {}]
  %s6 = inlined_call_operand.vmem [shape: f32[1,512], index: 6, kind: input, shape index: {}]
  %s7 = inlined_call_operand.hbm [shape: bf16[512,512], index: 7, kind: input, shape index: {}]
  %s8 = inlined_call_operand.vmem [shape: f32[1,512], index: 8, kind: input, shape index: {}]
  %s9 = inlined_call_operand.hbm [shape: bf16[512,128], index: 9, kind: input, shape index: {}]
  %s10 = inlined_call_operand.vmem [shape: f32[1,128], index: 10, kind: input, shape index: {}]
  %s11 = inlined_call_operand.hbm [shape: bf16[2,128], index: 11, kind: output, shape index: {}]
  %s12 = sld [smem:[#allocation0]]
  $region86: #{tpu_custom_call.1} parent=0
    _
  %s14 = ssub.s32 1, %s12
  %s15 = scalar_select 0, %s14, %s12
  $region1: #{tpu_custom_call.1} parent=0
    #allocation2 [shape = 'u8[4096]{0}', space=vmem, size = 0x1000, scoped, tag = 'input window, operand 0, single buffered']
    #allocation3 [shape = 's32[1]{0}', space=sflag, size = 0x4, scoped, tag = 'scoped memory for tpu_custom_call.1']
    #allocation4 [shape = 's32[1]{0}', space=sflag, size = 0x4, scoped, tag = 'scoped memory for tpu_custom_call.1']
    #allocation5 [shape = 'u8[4096]{0}', space=vmem, size = 0x1000, scoped, tag = 'input window, operand 1, single buffered']
    #allocation6 [shape = 's32[1]{0}', space=sflag, size = 0x4, scoped, tag = 'scoped memory for tpu_custom_call.1']
    #allocation7 [shape = 'u8[32768]{0}', space=vmem, size = 0x8000, scoped, tag = 'input window, operand 2, single buffered']
    #allocation8 [shape = 'u8[32768]{0}', space=vmem, size = 0x8000, scoped, tag = 'input window, operand 3, single buffered']
    #allocation9 [shape = 's32[1]{0}', space=sflag, size = 0x4, scoped, tag = 'scoped memory for tpu_custom_call.1']
    #allocation10 [shape = 'u8[32768]{0}', space=vmem, size = 0x8000, scoped, tag = 'input window, operand 4, single buffered']
    #allocation11 [shape = 'u8[32768]{0}', space=vmem, size = 0x8000, scoped, tag = 'input window, operand 5, single buffered']
    #allocation12 [shape = 's32[1]{0}', space=sflag, size = 0x4, scoped, tag = 'scoped memory for tpu_custom_call.1']
    #allocation13 [shape = 'u8[524288]{0}', space=vmem, size = 0x80000, scoped, tag = 'input window, operand 7, single buffered']
    #allocation14 [shape = 'u8[131072]{0}', space=vmem, size = 0x20000, scoped, tag = 'input window, operand 9, single buffered']
    #allocation15 [shape = 's32[1]{0}', space=sflag, size = 0x4, scoped, tag = 'scoped memory for tpu_custom_call.1']
    #allocation16 [shape = 'u8[512]{0}', space=vmem, size = 0x400, scoped, tag = 'output window, operand 0, single buffered']
    %16 = vsyncpa [#allocation3], 0
    %17 = vsyncpa [#allocation6], 0
    %18 = vsyncpa [#allocation9], 0
    %19 = vsyncpa [#allocation12], 0
    %20 = vsyncpa [#allocation15], 0
    %21 = vsyncpa [#allocation4], 0
    // Predicated region
    $region2: #{tpu_custom_call.1} parent=1 // pred_check
      _
    $region3: #{tpu_custom_call.1} parent=1 // pred_check_branch
      %23 = sbr.rel (0) target = $region5
    $region4: #{tpu_custom_call.1} parent=1 // pred_region
      %s25 = ssub.s32 128, 128
      %26 = vsyncadd [#allocation3], %s25
      %s27 = sshll.u32 [#allocation2], 4
      %s28 = int_to_ptr.vmem [resolvable:$true] %s27
      %33 = dma.hbm_to_vmem [thread:$0]  %s0, 128, %s28, [#allocation3], 64, 64, 4
    $region5: #{tpu_custom_call.1} parent=1 // pred_fallthru
      _
    // Predicated region
    $region6: #{tpu_custom_call.1} parent=1 // pred_check
      _
    $region7: #{tpu_custom_call.1} parent=1 // pred_check_branch
      %35 = sbr.rel (0) target = $region9
    $region8: #{tpu_custom_call.1} parent=1 // pred_region
      %s37 = ssub.s32 128, 128
      %38 = vsyncadd [#allocation6], %s37
      %s39 = sshll.u32 [#allocation5], 4
      %s40 = int_to_ptr.vmem [resolvable:$true] %s39
      %45 = dma.hbm_to_vmem [thread:$0]  %s1, 128, %s40, [#allocation6], 64, 64, 4
    $region9: #{tpu_custom_call.1} parent=1 // pred_fallthru
      _
    // Predicated region
    $region10: #{tpu_custom_call.1} parent=1 // pred_check
      _
    $region11: #{tpu_custom_call.1} parent=1 // pred_check_branch
      %47 = sbr.rel (0) target = $region13
    $region12: #{tpu_custom_call.1} parent=1 // pred_region
      %s49 = ssub.s32 1024, 1024
      %50 = vsyncadd [#allocation6], %s49
      %s51 = sshll.u32 [#allocation7], 4
      %s52 = int_to_ptr.vmem [resolvable:$true] %s51
      %57 = dma.hbm_to_vmem [thread:$0]  %s2, 1024, %s52, [#allocation6], 256, 256, 16
    $region13: #{tpu_custom_call.1} parent=1 // pred_fallthru
      _
    // Predicated region
    $region14: #{tpu_custom_call.1} parent=1 // pred_check
      _
    $region15: #{tpu_custom_call.1} parent=1 // pred_check_branch
      %59 = sbr.rel (0) target = $region17
    $region16: #{tpu_custom_call.1} parent=1 // pred_region
      %s61 = ssub.s32 1024, 1024
      %62 = vsyncadd [#allocation9], %s61
      %s63 = sshll.u32 [#allocation8], 4
      %s64 = int_to_ptr.vmem [resolvable:$true] %s63
      %69 = dma.hbm_to_vmem [thread:$0]  %s3, 1024, %s64, [#allocation9], 256, 256, 16
    $region17: #{tpu_custom_call.1} parent=1 // pred_fallthru
      _
    // Predicated region
    $region18: #{tpu_custom_call.1} parent=1 // pred_check
      _
    $region19: #{tpu_custom_call.1} parent=1 // pred_check_branch
      %71 = sbr.rel (0) target = $region21
    $region20: #{tpu_custom_call.1} parent=1 // pred_region
      %s73 = ssub.s32 1024, 1024
      %74 = vsyncadd [#allocation9], %s73
      %s75 = sshll.u32 [#allocation10], 4
      %s76 = int_to_ptr.vmem [resolvable:$true] %s75
      %81 = dma.hbm_to_vmem [thread:$0]  %s4, 1024, %s76, [#allocation9], 256, 256, 16
    $region21: #{tpu_custom_call.1} parent=1 // pred_fallthru
      _
    // Predicated region
    $region22: #{tpu_custom_call.1} parent=1 // pred_check
      _
    $region23: #{tpu_custom_call.1} parent=1 // pred_check_branch
      %83 = sbr.rel (0) target = $region25
    $region24: #{tpu_custom_call.1} parent=1 // pred_region
      %s85 = ssub.s32 1024, 1024
      %86 = vsyncadd [#allocation12], %s85
      %s87 = sshll.u32 [#allocation11], 4
      %s88 = int_to_ptr.vmem [resolvable:$true] %s87
      %93 = dma.hbm_to_vmem [thread:$0]  %s5, 1024, %s88, [#allocation12], 256, 256, 16
    $region25: #{tpu_custom_call.1} parent=1 // pred_fallthru
      _
    // Predicated region
    $region26: #{tpu_custom_call.1} parent=1 // pred_check
      _
    $region27: #{tpu_custom_call.1} parent=1 // pred_check_branch
      %95 = sbr.rel (0) target = $region29
    $region28: #{tpu_custom_call.1} parent=1 // pred_region
      _
    $region29: #{tpu_custom_call.1} parent=1 // pred_fallthru
      _
    // Predicated region
    $region30: #{tpu_custom_call.1} parent=1 // pred_check
      _
    $region31: #{tpu_custom_call.1} parent=1 // pred_check_branch
      %97 = sbr.rel (0) target = $region33
    $region32: #{tpu_custom_call.1} parent=1 // pred_region
      %s99 = ssub.s32 16384, 16384
      %100 = vsyncadd [#allocation12], %s99
      %s101 = sshll.u32 [#allocation13], 4
      %s102 = int_to_ptr.vmem [resolvable:$true] %s101
      %107 = dma.hbm_to_vmem [thread:$0]  %s7, 16384, %s102, [#allocation12], 256, 256, 16
    $region33: #{tpu_custom_call.1} parent=1 // pred_fallthru
      _
    // Predicated region
    $region34: #{tpu_custom_call.1} parent=1 // pred_check
      _
    $region35: #{tpu_custom_call.1} parent=1 // pred_check_branch
      %109 = sbr.rel (0) target = $region37
    $region36: #{tpu_custom_call.1} parent=1 // pred_region
      _
    $region37: #{tpu_custom_call.1} parent=1 // pred_fallthru
      _
    // Predicated region
    $region38: #{tpu_custom_call.1} parent=1 // pred_check
      _
    $region39: #{tpu_custom_call.1} parent=1 // pred_check_branch
      %111 = sbr.rel (0) target = $region41
    $region40: #{tpu_custom_call.1} parent=1 // pred_region
      %s113 = ssub.s32 4096, 4096
      %114 = vsyncadd [#allocation15], %s113
      %s115 = sshll.u32 [#allocation14], 4
      %s116 = int_to_ptr.vmem [resolvable:$true] %s115
      %121 = dma.hbm_to_vmem [thread:$0]  %s9, 4096, %s116, [#allocation15], 64, 64, 4
    $region41: #{tpu_custom_call.1} parent=1 // pred_fallthru
      _
    // Predicated region
    $region42: #{tpu_custom_call.1} parent=1 // pred_check
      _
    $region43: #{tpu_custom_call.1} parent=1 // pred_check_branch
      %123 = sbr.rel (0) target = $region45
    $region44: #{tpu_custom_call.1} parent=1 // pred_region
      _
    $region45: #{tpu_custom_call.1} parent=1 // pred_fallthru
      _
    // Predicated region
    $region46: #{tpu_custom_call.1} parent=1 // pred_check
      _
    $region47: #{tpu_custom_call.1} parent=1 // pred_check_branch
      %125 = sbr.rel (0) target = $region49
    $region48: #{tpu_custom_call.1} parent=1 // pred_region
      %126 = dma.done [#allocation3], 128
    $region49: #{tpu_custom_call.1} parent=1 // pred_fallthru
      _
    // Predicated region
    $region50: #{tpu_custom_call.1} parent=1 // pred_check
      _
    $region51: #{tpu_custom_call.1} parent=1 // pred_check_branch
      %128 = sbr.rel (0) target = $region53
    $region52: #{tpu_custom_call.1} parent=1 // pred_region
      %129 = dma.done [#allocation6], 128
    $region53: #{tpu_custom_call.1} parent=1 // pred_fallthru
      _
    // Predicated region
    $region54: #{tpu_custom_call.1} parent=1 // pred_check
      _
    $region55: #{tpu_custom_call.1} parent=1 // pred_check_branch
      %131 = sbr.rel (0) target = $region57
    $region56: #{tpu_custom_call.1} parent=1 // pred_region
      %132 = dma.done [#allocation6], 1024
    $region57: #{tpu_custom_call.1} parent=1 // pred_fallthru
      _
    // Predicated region
    $region58: #{tpu_custom_call.1} parent=1 // pred_check
      _
    $region59: #{tpu_custom_call.1} parent=1 // pred_check_branch
      %134 = sbr.rel (0) target = $region61
    $region60: #{tpu_custom_call.1} parent=1 // pred_region
      %135 = dma.done [#allocation9], 1024
    $region61: #{tpu_custom_call.1} parent=1 // pred_fallthru
      _
    // Predicated region
    $region62: #{tpu_custom_call.1} parent=1 // pred_check
      _
    $region63: #{tpu_custom_call.1} parent=1 // pred_check_branch
      %137 = sbr.rel (0) target = $region65
    $region64: #{tpu_custom_call.1} parent=1 // pred_region
      %138 = dma.done [#allocation9], 1024
    $region65: #{tpu_custom_call.1} parent=1 // pred_fallthru
      _
    // Predicated region
    $region66: #{tpu_custom_call.1} parent=1 // pred_check
      _
    $region67: #{tpu_custom_call.1} parent=1 // pred_check_branch
      %140 = sbr.rel (0) target = $region69
    $region68: #{tpu_custom_call.1} parent=1 // pred_region
      %141 = dma.done [#allocation12], 1024
    $region69: #{tpu_custom_call.1} parent=1 // pred_fallthru
      _
    // Predicated region
    $region70: #{tpu_custom_call.1} parent=1 // pred_check
      _
    $region71: #{tpu_custom_call.1} parent=1 // pred_check_branch
      %143 = sbr.rel (0) target = $region73
    $region72: #{tpu_custom_call.1} parent=1 // pred_region
      %144 = dma.done [#allocation12], 16384
    $region73: #{tpu_custom_call.1} parent=1 // pred_fallthru
      _
    // Predicated region
    $region74: #{tpu_custom_call.1} parent=1 // pred_check
      _
    $region75: #{tpu_custom_call.1} parent=1 // pred_check_branch
      %146 = sbr.rel (0) target = $region77
    $region76: #{tpu_custom_call.1} parent=1 // pred_region
      %147 = dma.done [#allocation15], 4096
    $region77: #{tpu_custom_call.1} parent=1 // pred_fallthru
      _
    %v149 = vld [vmem:[#allocation2] sm:$0xf]
    %v150 = vld [vmem:[#allocation2 + $0x4] sm:$0xf]
    %v151 = vunpack.c.l.bf16 %v149
    %v152 = vunpack.c.l.bf16 %v150
    %vm153 = vcmask 261120
    %v154 = vsel %vm153, %v151, 0.0
    %v155 = vrot.slane %v154, 4
    %v156 = vadd.f32 %v154, %v155
    %v157 = vrot.slane %v156, 2
    %v158 = vadd.f32 %v156, %v157
    %v159 = vrot.slane %v158, 1
    %v160 = vadd.f32 %v158, %v159
    %v161 = vsel %vm153, %v152, 0.0
    %v162 = vrot.slane %v161, 4
    %v163 = vadd.f32 %v161, %v162
    %v164 = vrot.slane %v163, 2
    %v165 = vadd.f32 %v163, %v164
    %v166 = vrot.slane %v165, 1
    %v167 = vadd.f32 %v165, %v166
    %v168 = vmul.f32 %v160, 0.125
    %v169 = vmul.f32 %v167, 0.125
    %v170 = vld [vmem:[#allocation5] sm:$0xf]
    %v171 = vld [vmem:[#allocation5 + $0x4] sm:$0xf]
    %v172 = vunpack.c.l.bf16 %v170
    %v173 = vunpack.c.l.bf16 %v171
    %v174 = vsel %vm153, %v172, 0.0
    %v175 = vrot.slane %v174, 4
    %v176 = vadd.f32 %v174, %v175
    %v177 = vrot.slane %v176, 2
    %v178 = vadd.f32 %v176, %v177
    %v179 = vrot.slane %v178, 1
    %v180 = vadd.f32 %v178, %v179
    %v181 = vsel %vm153, %v173, 0.0
    %v182 = vrot.slane %v181, 4
    %v183 = vadd.f32 %v181, %v182
    %v184 = vrot.slane %v183, 2
    %v185 = vadd.f32 %v183, %v184
    %v186 = vrot.slane %v185, 1
    %v187 = vadd.f32 %v185, %v186
    %v188 = vmul.f32 %v180, 0.125
    %v189 = vmul.f32 %v187, 0.125
    %v190 = vpack.c.bf16 %v168, %v168
    %v191 = vpack.c.bf16 %v169, %v169
    %v192 = vpack.c.bf16 %v188, %v188
    %v193 = vpack.c.bf16 %v189, %v189
    %v194 = vsub.f32 %v168, %v188
    %v195 = vsub.f32 %v169, %v189
    %v196 = vand.u32 2147483647, %v194
    %v197 = vand.u32 2147483647, %v195
    %v198 = vpack.c.bf16 %v196, %v196
    %v199 = vpack.c.bf16 %v197, %v197
    %v200 = vmul.f32 %v168, %v188
    %v201 = vmul.f32 %v169, %v189
    %v202 = vpack.c.bf16 %v200, %v200
    %v203 = vpack.c.bf16 %v201, %v201
    %v204 = vld [vmem:[#allocation7] sm:$0xff]
    %v205 = vld [vmem:[#allocation7 + $0x8] sm:$0xff]
    %v206 = vld [vmem:[#allocation7 + $0x10] sm:$0xff]
    %v207 = vld [vmem:[#allocation7 + $0x18] sm:$0xff]
    %v208 = vld [vmem:[#allocation7 + $0x20] sm:$0xff]
    %v209 = vld [vmem:[#allocation7 + $0x28] sm:$0xff]
    %v210 = vld [vmem:[#allocation7 + $0x30] sm:$0xff]
    %v211 = vld [vmem:[#allocation7 + $0x38] sm:$0xff]
    %v212 = vld [vmem:[#allocation8] sm:$0xff]
    %v213 = vld [vmem:[#allocation8 + $0x8] sm:$0xff]
    %v214 = vld [vmem:[#allocation8 + $0x10] sm:$0xff]
    %v215 = vld [vmem:[#allocation8 + $0x18] sm:$0xff]
    %v216 = vld [vmem:[#allocation8 + $0x20] sm:$0xff]
    %v217 = vld [vmem:[#allocation8 + $0x28] sm:$0xff]
    %v218 = vld [vmem:[#allocation8 + $0x30] sm:$0xff]
    %v219 = vld [vmem:[#allocation8 + $0x38] sm:$0xff]
    %v222 = vunpack.c.l.b16 %v192
    %v223 = vunpack.c.l.b16 %v193
    %vm224 = vcmask 1041409
    %v225 = vsel %vm224, %v223, %v222
    %v226 = vpack.c.b16 %v225, %v225
    %v235 = vunpack.c.l.b16 %v212
    %v236 = vunpack.c.h.b16 %v212
    %v237 = vunpack.c.l.b16 %v213
    %v238 = vunpack.c.h.b16 %v213
    %v239 = vunpack.c.l.b16 %v214
    %v240 = vunpack.c.h.b16 %v214
    %v241 = vunpack.c.l.b16 %v215
    %v242 = vunpack.c.h.b16 %v215
    %v243 = vunpack.c.l.b16 %v216
    %v244 = vunpack.c.h.b16 %v216
    %v245 = vunpack.c.l.b16 %v217
    %v246 = vunpack.c.h.b16 %v217
    %v247 = vunpack.c.l.b16 %v218
    %v248 = vunpack.c.h.b16 %v218
    %v249 = vunpack.c.l.b16 %v219
    %v250 = vunpack.c.h.b16 %v219
    %v251 = vpack.c.b16 %v239, %v235
    %v252 = vpack.c.b16 %v240, %v236
    %v253 = vpack.c.b16 %v241, %v237
    %v254 = vpack.c.b16 %v242, %v238
    %v255 = vpack.c.b16 %v247, %v243
    %v256 = vpack.c.b16 %v248, %v244
    %v257 = vpack.c.b16 %v249, %v245
    %v258 = vpack.c.b16 %v250, %v246
    %v268 = vsel %vm153, %v226, 0
    %270 = vmatprep.subr.bf16.mxu0 %v252
    %271 = vmatpush1.bf16.msra.mxu0 %v251
    %272 = vmatprep.subr.bf16.mxu0 %v256
    %273 = vmatpush1.bf16.msra.mxu0 %v255
    %274 = vmatprep.subr.bf16.mxu0 0
    %275 = vmatpush1.bf16.msra.mxu0 0
    %276 = vmatprep.subr.bf16.mxu0 0
    %277 = vmatpush1.bf16.msra.mxu0 0
    %278 = vmatprep.subr.bf16.mxu0 0
    %279 = vmatpush1.bf16.msra.mxu0 0
    %280 = vmatprep.subr.bf16.mxu0 0
    %281 = vmatpush1.bf16.msra.mxu0 0
    %282 = vmatprep.subr.bf16.mxu0 0
    %283 = vmatpush1.bf16.msra.mxu0 0
    %284 = vmatprep.subr.bf16.mxu0 0
    %285 = vmatpush1.bf16.msra.mxu0 0
    %286 = vmatprep.subr.bf16.mxu0 0
    %287 = vmatpush1.bf16.msra.mxu0 0
    %288 = vmatprep.subr.bf16.mxu0 0
    %289 = vmatpush1.bf16.msra.mxu0 0
    %290 = vmatprep.subr.bf16.mxu0 0
    %291 = vmatpush1.bf16.msra.mxu0 0
    %292 = vmatprep.subr.bf16.mxu0 0
    %293 = vmatpush1.bf16.msra.mxu0 0
    %294 = vmatprep.subr.bf16.mxu0 0
    %295 = vmatpush1.bf16.msra.mxu0 0
    %296 = vmatprep.subr.bf16.mxu0 0
    %297 = vmatpush1.bf16.msra.mxu0 0
    %298 = vmatprep.subr.bf16.mxu0 0
    %299 = vmatpush1.bf16.msra.mxu0 0
    %300 = vmatprep.subr.bf16.mxu0 0
    %301 = vmatpush1.bf16.msra.mxu0 0
    %302 = vmatprep.mubr.bf16.mxu0 0
    %303 = vmatmul.mubr.bf16.gmra.mrb[0].mxu0 %v268
    %v304 = vpop.f32.mrb[0].mxu0
    %v305 = vadd.f32 0.0, %v304
    %v306 = vpop.f32.mrb[0].mxu0
    %v307 = vadd.f32 0.0, %v306
    %v308 = vpop.f32.mrb[0].mxu0
    %v309 = vpop.f32.mrb[0].mxu0
    %310 = vdwg.mxu0
    %311 = vmatprep.subr.bf16.mxu0 %v254
    %312 = vmatpush1.bf16.msra.mxu0 %v253
    %313 = vmatprep.subr.bf16.mxu0 %v258
    %314 = vmatpush1.bf16.msra.mxu0 %v257
    %315 = vmatprep.subr.bf16.mxu0 0
    %316 = vmatpush1.bf16.msra.mxu0 0
    %317 = vmatprep.subr.bf16.mxu0 0
    %318 = vmatpush1.bf16.msra.mxu0 0
    %319 = vmatprep.subr.bf16.mxu0 0
    %320 = vmatpush1.bf16.msra.mxu0 0
    %321 = vmatprep.subr.bf16.mxu0 0
    %322 = vmatpush1.bf16.msra.mxu0 0
    %323 = vmatprep.subr.bf16.mxu0 0
    %324 = vmatpush1.bf16.msra.mxu0 0
    %325 = vmatprep.subr.bf16.mxu0 0
    %326 = vmatpush1.bf16.msra.mxu0 0
    %327 = vmatprep.subr.bf16.mxu0 0
    %328 = vmatpush1.bf16.msra.mxu0 0
    %329 = vmatprep.subr.bf16.mxu0 0
    %330 = vmatpush1.bf16.msra.mxu0 0
    %331 = vmatprep.subr.bf16.mxu0 0
    %332 = vmatpush1.bf16.msra.mxu0 0
    %333 = vmatprep.subr.bf16.mxu0 0
    %334 = vmatpush1.bf16.msra.mxu0 0
    %335 = vmatprep.subr.bf16.mxu0 0
    %336 = vmatpush1.bf16.msra.mxu0 0
    %337 = vmatprep.subr.bf16.mxu0 0
    %338 = vmatpush1.bf16.msra.mxu0 0
    %339 = vmatprep.subr.bf16.mxu0 0
    %340 = vmatpush1.bf16.msra.mxu0 0
    %341 = vmatprep.subr.bf16.mxu0 0
    %342 = vmatpush1.bf16.msra.mxu0 0
    %343 = vmatprep.mubr.bf16.mxu0 0
    %344 = vmatmul.mubr.bf16.gmra.mrb[0].mxu0 %v268
    %v345 = vpop.f32.mrb[0].mxu0
    %v346 = vadd.f32 0.0, %v345
    %v347 = vpop.f32.mrb[0].mxu0
    %v348 = vadd.f32 0.0, %v347
    %v349 = vpop.f32.mrb[0].mxu0
    %v350 = vpop.f32.mrb[0].mxu0
    %351 = vdwg.mxu0
    %v354 = vunpack.c.l.b16 %v190
    %v355 = vunpack.c.l.b16 %v191
    %v356 = vsel %vm224, %v355, %v354
    %v357 = vpack.c.b16 %v356, %v356
    %v366 = vunpack.c.l.b16 %v204
    %v367 = vunpack.c.h.b16 %v204
    %v368 = vunpack.c.l.b16 %v205
    %v369 = vunpack.c.h.b16 %v205
    %v370 = vunpack.c.l.b16 %v206
    %v371 = vunpack.c.h.b16 %v206
    %v372 = vunpack.c.l.b16 %v207
    %v373 = vunpack.c.h.b16 %v207
    %v374 = vunpack.c.l.b16 %v208
    %v375 = vunpack.c.h.b16 %v208
    %v376 = vunpack.c.l.b16 %v209
    %v377 = vunpack.c.h.b16 %v209
    %v378 = vunpack.c.l.b16 %v210
    %v379 = vunpack.c.h.b16 %v210
    %v380 = vunpack.c.l.b16 %v211
    %v381 = vunpack.c.h.b16 %v211
    %v382 = vpack.c.b16 %v370, %v366
    %v383 = vpack.c.b16 %v371, %v367
    %v384 = vpack.c.b16 %v372, %v368
    %v385 = vpack.c.b16 %v373, %v369
    %v386 = vpack.c.b16 %v378, %v374
    %v387 = vpack.c.b16 %v379, %v375
    %v388 = vpack.c.b16 %v380, %v376
    %v389 = vpack.c.b16 %v381, %v377
    %v399 = vsel %vm153, %v357, 0
    %401 = vmatprep.subr.bf16.mxu0 %v383
    %402 = vmatpush1.bf16.msra.mxu0 %v382
    %403 = vmatprep.subr.bf16.mxu0 %v387
    %404 = vmatpush1.bf16.msra.mxu0 %v386
    %405 = vmatprep.subr.bf16.mxu0 0
    %406 = vmatpush1.bf16.msra.mxu0 0
    %407 = vmatprep.subr.bf16.mxu0 0
    %408 = vmatpush1.bf16.msra.mxu0 0
    %409 = vmatprep.subr.bf16.mxu0 0
    %410 = vmatpush1.bf16.msra.mxu0 0
    %411 = vmatprep.subr.bf16.mxu0 0
    %412 = vmatpush1.bf16.msra.mxu0 0
    %413 = vmatprep.subr.bf16.mxu0 0
    %414 = vmatpush1.bf16.msra.mxu0 0
    %415 = vmatprep.subr.bf16.mxu0 0
    %416 = vmatpush1.bf16.msra.mxu0 0
    %417 = vmatprep.subr.bf16.mxu0 0
    %418 = vmatpush1.bf16.msra.mxu0 0
    %419 = vmatprep.subr.bf16.mxu0 0
    %420 = vmatpush1.bf16.msra.mxu0 0
    %421 = vmatprep.subr.bf16.mxu0 0
    %422 = vmatpush1.bf16.msra.mxu0 0
    %423 = vmatprep.subr.bf16.mxu0 0
    %424 = vmatpush1.bf16.msra.mxu0 0
    %425 = vmatprep.subr.bf16.mxu0 0
    %426 = vmatpush1.bf16.msra.mxu0 0
    %427 = vmatprep.subr.bf16.mxu0 0
    %428 = vmatpush1.bf16.msra.mxu0 0
    %429 = vmatprep.subr.bf16.mxu0 0
    %430 = vmatpush1.bf16.msra.mxu0 0
    %431 = vmatprep.subr.bf16.mxu0 0
    %432 = vmatpush1.bf16.msra.mxu0 0
    %433 = vmatprep.mubr.bf16.mxu0 0
    %434 = vmatmul.mubr.bf16.gmra.mrb[0].mxu0 %v399
    %v435 = vpop.f32.mrb[0].mxu0
    %v436 = vadd.f32 %v305, %v435
    %v437 = vpop.f32.mrb[0].mxu0
    %v438 = vadd.f32 %v307, %v437
    %v439 = vpop.f32.mrb[0].mxu0
    %v440 = vpop.f32.mrb[0].mxu0
    %441 = vdwg.mxu0
    %442 = vmatprep.subr.bf16.mxu0 %v385
    %443 = vmatpush1.bf16.msra.mxu0 %v384
    %444 = vmatprep.subr.bf16.mxu0 %v389
    %445 = vmatpush1.bf16.msra.mxu0 %v388
    %446 = vmatprep.subr.bf16.mxu0 0
    %447 = vmatpush1.bf16.msra.mxu0 0
    %448 = vmatprep.subr.bf16.mxu0 0
    %449 = vmatpush1.bf16.msra.mxu0 0
    %450 = vmatprep.subr.bf16.mxu0 0
    %451 = vmatpush1.bf16.msra.mxu0 0
    %452 = vmatprep.subr.bf16.mxu0 0
    %453 = vmatpush1.bf16.msra.mxu0 0
    %454 = vmatprep.subr.bf16.mxu0 0
    %455 = vmatpush1.bf16.msra.mxu0 0
    %456 = vmatprep.subr.bf16.mxu0 0
    %457 = vmatpush1.bf16.msra.mxu0 0
    %458 = vmatprep.subr.bf16.mxu0 0
    %459 = vmatpush1.bf16.msra.mxu0 0
    %460 = vmatprep.subr.bf16.mxu0 0
    %461 = vmatpush1.bf16.msra.mxu0 0
    %462 = vmatprep.subr.bf16.mxu0 0
    %463 = vmatpush1.bf16.msra.mxu0 0
    %464 = vmatprep.subr.bf16.mxu0 0
    %465 = vmatpush1.bf16.msra.mxu0 0
    %466 = vmatprep.subr.bf16.mxu0 0
    %467 = vmatpush1.bf16.msra.mxu0 0
    %468 = vmatprep.subr.bf16.mxu0 0
    %469 = vmatpush1.bf16.msra.mxu0 0
    %470 = vmatprep.subr.bf16.mxu0 0
    %471 = vmatpush1.bf16.msra.mxu0 0
    %472 = vmatprep.subr.bf16.mxu0 0
    %473 = vmatpush1.bf16.msra.mxu0 0
    %474 = vmatprep.mubr.bf16.mxu0 0
    %475 = vmatmul.mubr.bf16.gmra.mrb[0].mxu0 %v399
    %v476 = vpop.f32.mrb[0].mxu0
    %v477 = vadd.f32 %v346, %v476
    %v478 = vpop.f32.mrb[0].mxu0
    %v479 = vadd.f32 %v348, %v478
    %v480 = vpop.f32.mrb[0].mxu0
    %v481 = vpop.f32.mrb[0].mxu0
    %482 = vdwg.mxu0
    %v483 = vld [vmem:[#allocation10] sm:$0xff]
    %v484 = vld [vmem:[#allocation10 + $0x8] sm:$0xff]
    %v485 = vld [vmem:[#allocation10 + $0x10] sm:$0xff]
    %v486 = vld [vmem:[#allocation10 + $0x18] sm:$0xff]
    %v487 = vld [vmem:[#allocation10 + $0x20] sm:$0xff]
    %v488 = vld [vmem:[#allocation10 + $0x28] sm:$0xff]
    %v489 = vld [vmem:[#allocation10 + $0x30] sm:$0xff]
    %v490 = vld [vmem:[#allocation10 + $0x38] sm:$0xff]
    %v493 = vunpack.c.l.b16 %v198
    %v494 = vunpack.c.l.b16 %v199
    %v495 = vsel %vm224, %v494, %v493
    %v496 = vpack.c.b16 %v495, %v495
    %v505 = vunpack.c.l.b16 %v483
    %v506 = vunpack.c.h.b16 %v483
    %v507 = vunpack.c.l.b16 %v484
    %v508 = vunpack.c.h.b16 %v484
    %v509 = vunpack.c.l.b16 %v485
    %v510 = vunpack.c.h.b16 %v485
    %v511 = vunpack.c.l.b16 %v486
    %v512 = vunpack.c.h.b16 %v486
    %v513 = vunpack.c.l.b16 %v487
    %v514 = vunpack.c.h.b16 %v487
    %v515 = vunpack.c.l.b16 %v488
    %v516 = vunpack.c.h.b16 %v488
    %v517 = vunpack.c.l.b16 %v489
    %v518 = vunpack.c.h.b16 %v489
    %v519 = vunpack.c.l.b16 %v490
    %v520 = vunpack.c.h.b16 %v490
    %v521 = vpack.c.b16 %v509, %v505
    %v522 = vpack.c.b16 %v510, %v506
    %v523 = vpack.c.b16 %v511, %v507
    %v524 = vpack.c.b16 %v512, %v508
    %v525 = vpack.c.b16 %v517, %v513
    %v526 = vpack.c.b16 %v518, %v514
    %v527 = vpack.c.b16 %v519, %v515
    %v528 = vpack.c.b16 %v520, %v516
    %v538 = vsel %vm153, %v496, 0
    %540 = vmatprep.subr.bf16.mxu0 %v522
    %541 = vmatpush1.bf16.msra.mxu0 %v521
    %542 = vmatprep.subr.bf16.mxu0 %v526
    %543 = vmatpush1.bf16.msra.mxu0 %v525
    %544 = vmatprep.subr.bf16.mxu0 0
    %545 = vmatpush1.bf16.msra.mxu0 0
    %546 = vmatprep.subr.bf16.mxu0 0
    %547 = vmatpush1.bf16.msra.mxu0 0
    %548 = vmatprep.subr.bf16.mxu0 0
    %549 = vmatpush1.bf16.msra.mxu0 0
    %550 = vmatprep.subr.bf16.mxu0 0
    %551 = vmatpush1.bf16.msra.mxu0 0
    %552 = vmatprep.subr.bf16.mxu0 0
    %553 = vmatpush1.bf16.msra.mxu0 0
    %554 = vmatprep.subr.bf16.mxu0 0
    %555 = vmatpush1.bf16.msra.mxu0 0
    %556 = vmatprep.subr.bf16.mxu0 0
    %557 = vmatpush1.bf16.msra.mxu0 0
    %558 = vmatprep.subr.bf16.mxu0 0
    %559 = vmatpush1.bf16.msra.mxu0 0
    %560 = vmatprep.subr.bf16.mxu0 0
    %561 = vmatpush1.bf16.msra.mxu0 0
    %562 = vmatprep.subr.bf16.mxu0 0
    %563 = vmatpush1.bf16.msra.mxu0 0
    %564 = vmatprep.subr.bf16.mxu0 0
    %565 = vmatpush1.bf16.msra.mxu0 0
    %566 = vmatprep.subr.bf16.mxu0 0
    %567 = vmatpush1.bf16.msra.mxu0 0
    %568 = vmatprep.subr.bf16.mxu0 0
    %569 = vmatpush1.bf16.msra.mxu0 0
    %570 = vmatprep.subr.bf16.mxu0 0
    %571 = vmatpush1.bf16.msra.mxu0 0
    %572 = vmatprep.mubr.bf16.mxu0 0
    %573 = vmatmul.mubr.bf16.gmra.mrb[0].mxu0 %v538
    %v574 = vpop.f32.mrb[0].mxu0
    %v575 = vadd.f32 0.0, %v574
    %v576 = vpop.f32.mrb[0].mxu0
    %v577 = vadd.f32 0.0, %v576
    %v578 = vpop.f32.mrb[0].mxu0
    %v579 = vpop.f32.mrb[0].mxu0
    %580 = vdwg.mxu0
    %581 = vmatprep.subr.bf16.mxu0 %v524
    %582 = vmatpush1.bf16.msra.mxu0 %v523
    %583 = vmatprep.subr.bf16.mxu0 %v528
    %584 = vmatpush1.bf16.msra.mxu0 %v527
    %585 = vmatprep.subr.bf16.mxu0 0
    %586 = vmatpush1.bf16.msra.mxu0 0
    %587 = vmatprep.subr.bf16.mxu0 0
    %588 = vmatpush1.bf16.msra.mxu0 0
    %589 = vmatprep.subr.bf16.mxu0 0
    %590 = vmatpush1.bf16.msra.mxu0 0
    %591 = vmatprep.subr.bf16.mxu0 0
    %592 = vmatpush1.bf16.msra.mxu0 0
    %593 = vmatprep.subr.bf16.mxu0 0
    %594 = vmatpush1.bf16.msra.mxu0 0
    %595 = vmatprep.subr.bf16.mxu0 0
    %596 = vmatpush1.bf16.msra.mxu0 0
    %597 = vmatprep.subr.bf16.mxu0 0
    %598 = vmatpush1.bf16.msra.mxu0 0
    %599 = vmatprep.subr.bf16.mxu0 0
    %600 = vmatpush1.bf16.msra.mxu0 0
    %601 = vmatprep.subr.bf16.mxu0 0
    %602 = vmatpush1.bf16.msra.mxu0 0
    %603 = vmatprep.subr.bf16.mxu0 0
    %604 = vmatpush1.bf16.msra.mxu0 0
    %605 = vmatprep.subr.bf16.mxu0 0
    %606 = vmatpush1.bf16.msra.mxu0 0
    %607 = vmatprep.subr.bf16.mxu0 0
    %608 = vmatpush1.bf16.msra.mxu0 0
    %609 = vmatprep.subr.bf16.mxu0 0
    %610 = vmatpush1.bf16.msra.mxu0 0
    %611 = vmatprep.subr.bf16.mxu0 0
    %612 = vmatpush1.bf16.msra.mxu0 0
    %613 = vmatprep.mubr.bf16.mxu0 0
    %614 = vmatmul.mubr.bf16.gmra.mrb[0].mxu0 %v538
    %v615 = vpop.f32.mrb[0].mxu0
    %v616 = vadd.f32 0.0, %v615
    %v617 = vpop.f32.mrb[0].mxu0
    %v618 = vadd.f32 0.0, %v617
    %v619 = vpop.f32.mrb[0].mxu0
    %v620 = vpop.f32.mrb[0].mxu0
    %621 = vdwg.mxu0
    %v622 = vadd.f32 %v436, %v575
    %v623 = vadd.f32 %v438, %v577
    %v624 = vadd.f32 %v477, %v616
    %v625 = vadd.f32 %v479, %v618
    %v626 = vld [vmem:[#allocation11] sm:$0xff]
    %v627 = vld [vmem:[#allocation11 + $0x8] sm:$0xff]
    %v628 = vld [vmem:[#allocation11 + $0x10] sm:$0xff]
    %v629 = vld [vmem:[#allocation11 + $0x18] sm:$0xff]
    %v630 = vld [vmem:[#allocation11 + $0x20] sm:$0xff]
    %v631 = vld [vmem:[#allocation11 + $0x28] sm:$0xff]
    %v632 = vld [vmem:[#allocation11 + $0x30] sm:$0xff]
    %v633 = vld [vmem:[#allocation11 + $0x38] sm:$0xff]
    %v636 = vunpack.c.l.b16 %v202
    %v637 = vunpack.c.l.b16 %v203
    %v638 = vsel %vm224, %v637, %v636
    %v639 = vpack.c.b16 %v638, %v638
    %v648 = vunpack.c.l.b16 %v626
    %v649 = vunpack.c.h.b16 %v626
    %v650 = vunpack.c.l.b16 %v627
    %v651 = vunpack.c.h.b16 %v627
    %v652 = vunpack.c.l.b16 %v628
    %v653 = vunpack.c.h.b16 %v628
    %v654 = vunpack.c.l.b16 %v629
    %v655 = vunpack.c.h.b16 %v629
    %v656 = vunpack.c.l.b16 %v630
    %v657 = vunpack.c.h.b16 %v630
    %v658 = vunpack.c.l.b16 %v631
    %v659 = vunpack.c.h.b16 %v631
    %v660 = vunpack.c.l.b16 %v632
    %v661 = vunpack.c.h.b16 %v632
    %v662 = vunpack.c.l.b16 %v633
    %v663 = vunpack.c.h.b16 %v633
    %v664 = vpack.c.b16 %v652, %v648
    %v665 = vpack.c.b16 %v653, %v649
    %v666 = vpack.c.b16 %v654, %v650
    %v667 = vpack.c.b16 %v655, %v651
    %v668 = vpack.c.b16 %v660, %v656
    %v669 = vpack.c.b16 %v661, %v657
    %v670 = vpack.c.b16 %v662, %v658
    %v671 = vpack.c.b16 %v663, %v659
    %v681 = vsel %vm153, %v639, 0
    %683 = vmatprep.subr.bf16.mxu0 %v665
    %684 = vmatpush1.bf16.msra.mxu0 %v664
    %685 = vmatprep.subr.bf16.mxu0 %v669
    %686 = vmatpush1.bf16.msra.mxu0 %v668
    %687 = vmatprep.subr.bf16.mxu0 0
    %688 = vmatpush1.bf16.msra.mxu0 0
    %689 = vmatprep.subr.bf16.mxu0 0
    %690 = vmatpush1.bf16.msra.mxu0 0
    %691 = vmatprep.subr.bf16.mxu0 0
    %692 = vmatpush1.bf16.msra.mxu0 0
    %693 = vmatprep.subr.bf16.mxu0 0
    %694 = vmatpush1.bf16.msra.mxu0 0
    %695 = vmatprep.subr.bf16.mxu0 0
    %696 = vmatpush1.bf16.msra.mxu0 0
    %697 = vmatprep.subr.bf16.mxu0 0
    %698 = vmatpush1.bf16.msra.mxu0 0
    %699 = vmatprep.subr.bf16.mxu0 0
    %700 = vmatpush1.bf16.msra.mxu0 0
    %701 = vmatprep.subr.bf16.mxu0 0
    %702 = vmatpush1.bf16.msra.mxu0 0
    %703 = vmatprep.subr.bf16.mxu0 0
    %704 = vmatpush1.bf16.msra.mxu0 0
    %705 = vmatprep.subr.bf16.mxu0 0
    %706 = vmatpush1.bf16.msra.mxu0 0
    %707 = vmatprep.subr.bf16.mxu0 0
    %708 = vmatpush1.bf16.msra.mxu0 0
    %709 = vmatprep.subr.bf16.mxu0 0
    %710 = vmatpush1.bf16.msra.mxu0 0
    %711 = vmatprep.subr.bf16.mxu0 0
    %712 = vmatpush1.bf16.msra.mxu0 0
    %713 = vmatprep.subr.bf16.mxu0 0
    %714 = vmatpush1.bf16.msra.mxu0 0
    %715 = vmatprep.mubr.bf16.mxu0 0
    %716 = vmatmul.mubr.bf16.gmra.mrb[0].mxu0 %v681
    %v717 = vpop.f32.mrb[0].mxu0
    %v718 = vadd.f32 0.0, %v717
    %v719 = vpop.f32.mrb[0].mxu0
    %v720 = vadd.f32 0.0, %v719
    %v721 = vpop.f32.mrb[0].mxu0
    %v722 = vpop.f32.mrb[0].mxu0
    %723 = vdwg.mxu0
    %724 = vmatprep.subr.bf16.mxu0 %v667
    %725 = vmatpush1.bf16.msra.mxu0 %v666
    %726 = vmatprep.subr.bf16.mxu0 %v671
    %727 = vmatpush1.bf16.msra.mxu0 %v670
    %728 = vmatprep.subr.bf16.mxu0 0
    %729 = vmatpush1.bf16.msra.mxu0 0
    %730 = vmatprep.subr.bf16.mxu0 0
    %731 = vmatpush1.bf16.msra.mxu0 0
    %732 = vmatprep.subr.bf16.mxu0 0
    %733 = vmatpush1.bf16.msra.mxu0 0
    %734 = vmatprep.subr.bf16.mxu0 0
    %735 = vmatpush1.bf16.msra.mxu0 0
    %736 = vmatprep.subr.bf16.mxu0 0
    %737 = vmatpush1.bf16.msra.mxu0 0
    %738 = vmatprep.subr.bf16.mxu0 0
    %739 = vmatpush1.bf16.msra.mxu0 0
    %740 = vmatprep.subr.bf16.mxu0 0
    %741 = vmatpush1.bf16.msra.mxu0 0
    %742 = vmatprep.subr.bf16.mxu0 0
    %743 = vmatpush1.bf16.msra.mxu0 0
    %744 = vmatprep.subr.bf16.mxu0 0
    %745 = vmatpush1.bf16.msra.mxu0 0
    %746 = vmatprep.subr.bf16.mxu0 0
    %747 = vmatpush1.bf16.msra.mxu0 0
    %748 = vmatprep.subr.bf16.mxu0 0
    %749 = vmatpush1.bf16.msra.mxu0 0
    %750 = vmatprep.subr.bf16.mxu0 0
    %751 = vmatpush1.bf16.msra.mxu0 0
    %752 = vmatprep.subr.bf16.mxu0 0
    %753 = vmatpush1.bf16.msra.mxu0 0
    %754 = vmatprep.subr.bf16.mxu0 0
    %755 = vmatpush1.bf16.msra.mxu0 0
    %756 = vmatprep.mubr.bf16.mxu0 0
    %757 = vmatmul.mubr.bf16.gmra.mrb[0].mxu0 %v681
    %v758 = vpop.f32.mrb[0].mxu0
    %v759 = vadd.f32 0.0, %v758
    %v760 = vpop.f32.mrb[0].mxu0
    %v761 = vadd.f32 0.0, %v760
    %v762 = vpop.f32.mrb[0].mxu0
    %v763 = vpop.f32.mrb[0].mxu0
    %764 = vdwg.mxu0
    %v765 = vadd.f32 %v622, %v718
    %v766 = vadd.f32 %v623, %v720
    %v767 = vadd.f32 %v624, %v759
    %v768 = vadd.f32 %v625, %v761
    %v769 = vld [vmem:[%s6] sm:$0xf]
    %v771 = vlaneseq
    %v772 = vshrl.u32 %v771, 7
    %v773 = vsub.s32 0, %v772
    %v774 = vrot.slane %v769, %v773
    %v775 = vlaneseq
    %v776 = vshrl.u32 %v775, 7
    %v777 = vsub.s32 1, %v776
    %v778 = vrot.slane %v769, %v777
    %v779 = vlaneseq
    %v780 = vshrl.u32 %v779, 7
    %v781 = vsub.s32 2, %v780
    %v782 = vrot.slane %v769, %v781
    %v783 = vlaneseq
    %v784 = vshrl.u32 %v783, 7
    %v785 = vsub.s32 3, %v784
    %v786 = vrot.slane %v769, %v785
    %v791 = vadd.f32 %v765, %v774
    %v792 = vadd.f32 %v766, %v778
    %v793 = vadd.f32 %v767, %v782
    %v794 = vadd.f32 %v768, %v786
    %v795 = vpack.c.bf16 %v791, %v791
    %v796 = vpack.c.bf16 %v792, %v792
    %v797 = vpack.c.bf16 %v793, %v793
    %v798 = vpack.c.bf16 %v794, %v794
    %v799 = vld [vmem:[#allocation13] sm:$0xff]
    %v800 = vld [vmem:[#allocation13 + $0x8] sm:$0xff]
    %v801 = vld [vmem:[#allocation13 + $0x10] sm:$0xff]
    %v802 = vld [vmem:[#allocation13 + $0x18] sm:$0xff]
    %v803 = vld [vmem:[#allocation13 + $0x20] sm:$0xff]
    %v804 = vld [vmem:[#allocation13 + $0x28] sm:$0xff]
    %v805 = vld [vmem:[#allocation13 + $0x30] sm:$0xff]
    %v806 = vld [vmem:[#allocation13 + $0x38] sm:$0xff]
    %v807 = vld [vmem:[#allocation13 + $0x40] sm:$0xff]
    %v808 = vld [vmem:[#allocation13 + $0x48] sm:$0xff]
    %v809 = vld [vmem:[#allocation13 + $0x50] sm:$0xff]
    %v810 = vld [vmem:[#allocation13 + $0x58] sm:$0xff]
    %v811 = vld [vmem:[#allocation13 + $0x60] sm:$0xff]
    %v812 = vld [vmem:[#allocation13 + $0x68] sm:$0xff]
    %v813 = vld [vmem:[#allocation13 + $0x70] sm:$0xff]
    %v814 = vld [vmem:[#allocation13 + $0x78] sm:$0xff]
    %v815 = vld [vmem:[#allocation13 + $0x80] sm:$0xff]
    %v816 = vld [vmem:[#allocation13 + $0x88] sm:$0xff]
    %v817 = vld [vmem:[#allocation13 + $0x90] sm:$0xff]
    %v818 = vld [vmem:[#allocation13 + $0x98] sm:$0xff]
    %v819 = vld [vmem:[#allocation13 + $0xa0] sm:$0xff]
    %v820 = vld [vmem:[#allocation13 + $0xa8] sm:$0xff]
    %v821 = vld [vmem:[#allocation13 + $0xb0] sm:$0xff]
    %v822 = vld [vmem:[#allocation13 + $0xb8] sm:$0xff]
    %v823 = vld [vmem:[#allocation13 + $0xc0] sm:$0xff]
    %v824 = vld [vmem:[#allocation13 + $0xc8] sm:$0xff]
    %v825 = vld [vmem:[#allocation13 + $0xd0] sm:$0xff]
    %v826 = vld [vmem:[#allocation13 + $0xd8] sm:$0xff]
    %v827 = vld [vmem:[#allocation13 + $0xe0] sm:$0xff]
    %v828 = vld [vmem:[#allocation13 + $0xe8] sm:$0xff]
    %v829 = vld [vmem:[#allocation13 + $0xf0] sm:$0xff]
    %v830 = vld [vmem:[#allocation13 + $0xf8] sm:$0xff]
    %v831 = vld [vmem:[#allocation13 + $0x100] sm:$0xff]
    %v832 = vld [vmem:[#allocation13 + $0x108] sm:$0xff]
    %v833 = vld [vmem:[#allocation13 + $0x110] sm:$0xff]
    %v834 = vld [vmem:[#allocation13 + $0x118] sm:$0xff]
    %v835 = vld [vmem:[#allocation13 + $0x120] sm:$0xff]
    %v836 = vld [vmem:[#allocation13 + $0x128] sm:$0xff]
    %v837 = vld [vmem:[#allocation13 + $0x130] sm:$0xff]
    %v838 = vld [vmem:[#allocation13 + $0x138] sm:$0xff]
    %v839 = vld [vmem:[#allocation13 + $0x140] sm:$0xff]
    %v840 = vld [vmem:[#allocation13 + $0x148] sm:$0xff]
    %v841 = vld [vmem:[#allocation13 + $0x150] sm:$0xff]
    %v842 = vld [vmem:[#allocation13 + $0x158] sm:$0xff]
    %v843 = vld [vmem:[#allocation13 + $0x160] sm:$0xff]
    %v844 = vld [vmem:[#allocation13 + $0x168] sm:$0xff]
    %v845 = vld [vmem:[#allocation13 + $0x170] sm:$0xff]
    %v846 = vld [vmem:[#allocation13 + $0x178] sm:$0xff]
    %v847 = vld [vmem:[#allocation13 + $0x180] sm:$0xff]
    %v848 = vld [vmem:[#allocation13 + $0x188] sm:$0xff]
    %v849 = vld [vmem:[#allocation13 + $0x190] sm:$0xff]
    %v850 = vld [vmem:[#allocation13 + $0x198] sm:$0xff]
    %v851 = vld [vmem:[#allocation13 + $0x1a0] sm:$0xff]
    %v852 = vld [vmem:[#allocation13 + $0x1a8] sm:$0xff]
    %v853 = vld [vmem:[#allocation13 + $0x1b0] sm:$0xff]
    %v854 = vld [vmem:[#allocation13 + $0x1b8] sm:$0xff]
    %v855 = vld [vmem:[#allocation13 + $0x1c0] sm:$0xff]
    %v856 = vld [vmem:[#allocation13 + $0x1c8] sm:$0xff]
    %v857 = vld [vmem:[#allocation13 + $0x1d0] sm:$0xff]
    %v858 = vld [vmem:[#allocation13 + $0x1d8] sm:$0xff]
    %v859 = vld [vmem:[#allocation13 + $0x1e0] sm:$0xff]
    %v860 = vld [vmem:[#allocation13 + $0x1e8] sm:$0xff]
    %v861 = vld [vmem:[#allocation13 + $0x1f0] sm:$0xff]
    %v862 = vld [vmem:[#allocation13 + $0x1f8] sm:$0xff]
    %v863 = vld [vmem:[#allocation13 + $0x200] sm:$0xff]
    %v864 = vld [vmem:[#allocation13 + $0x208] sm:$0xff]
    %v865 = vld [vmem:[#allocation13 + $0x210] sm:$0xff]
    %v866 = vld [vmem:[#allocation13 + $0x218] sm:$0xff]
    %v867 = vld [vmem:[#allocation13 + $0x220] sm:$0xff]
    %v868 = vld [vmem:[#allocation13 + $0x228] sm:$0xff]
    %v869 = vld [vmem:[#allocation13 + $0x230] sm:$0xff]
    %v870 = vld [vmem:[#allocation13 + $0x238] sm:$0xff]
    %v871 = vld [vmem:[#allocation13 + $0x240] sm:$0xff]
    %v872 = vld [vmem:[#allocation13 + $0x248] sm:$0xff]
    %v873 = vld [vmem:[#allocation13 + $0x250] sm:$0xff]
    %v874 = vld [vmem:[#allocation13 + $0x258] sm:$0xff]
    %v875 = vld [vmem:[#allocation13 + $0x260] sm:$0xff]
    %v876 = vld [vmem:[#allocation13 + $0x268] sm:$0xff]
    %v877 = vld [vmem:[#allocation13 + $0x270] sm:$0xff]
    %v878 = vld [vmem:[#allocation13 + $0x278] sm:$0xff]
    %v879 = vld [vmem:[#allocation13 + $0x280] sm:$0xff]
    %v880 = vld [vmem:[#allocation13 + $0x288] sm:$0xff]
    %v881 = vld [vmem:[#allocation13 + $0x290] sm:$0xff]
    %v882 = vld [vmem:[#allocation13 + $0x298] sm:$0xff]
    %v883 = vld [vmem:[#allocation13 + $0x2a0] sm:$0xff]
    %v884 = vld [vmem:[#allocation13 + $0x2a8] sm:$0xff]
    %v885 = vld [vmem:[#allocation13 + $0x2b0] sm:$0xff]
    %v886 = vld [vmem:[#allocation13 + $0x2b8] sm:$0xff]
    %v887 = vld [vmem:[#allocation13 + $0x2c0] sm:$0xff]
    %v888 = vld [vmem:[#allocation13 + $0x2c8] sm:$0xff]
    %v889 = vld [vmem:[#allocation13 + $0x2d0] sm:$0xff]
    %v890 = vld [vmem:[#allocation13 + $0x2d8] sm:$0xff]
    %v891 = vld [vmem:[#allocation13 + $0x2e0] sm:$0xff]
    %v892 = vld [vmem:[#allocation13 + $0x2e8] sm:$0xff]
    %v893 = vld [vmem:[#allocation13 + $0x2f0] sm:$0xff]
    %v894 = vld [vmem:[#allocation13 + $0x2f8] sm:$0xff]
    %v895 = vld [vmem:[#allocation13 + $0x300] sm:$0xff]
    %v896 = vld [vmem:[#allocation13 + $0x308] sm:$0xff]
    %v897 = vld [vmem:[#allocation13 + $0x310] sm:$0xff]
    %v898 = vld [vmem:[#allocation13 + $0x318] sm:$0xff]
    %v899 = vld [vmem:[#allocation13 + $0x320] sm:$0xff]
    %v900 = vld [vmem:[#allocation13 + $0x328] sm:$0xff]
    %v901 = vld [vmem:[#allocation13 + $0x330] sm:$0xff]
    %v902 = vld [vmem:[#allocation13 + $0x338] sm:$0xff]
    %v903 = vld [vmem:[#allocation13 + $0x340] sm:$0xff]
    %v904 = vld [vmem:[#allocation13 + $0x348] sm:$0xff]
    %v905 = vld [vmem:[#allocation13 + $0x350] sm:$0xff]
    %v906 = vld [vmem:[#allocation13 + $0x358] sm:$0xff]
    %v907 = vld [vmem:[#allocation13 + $0x360] sm:$0xff]
    %v908 = vld [vmem:[#allocation13 + $0x368] sm:$0xff]
    %v909 = vld [vmem:[#allocation13 + $0x370] sm:$0xff]
    %v910 = vld [vmem:[#allocation13 + $0x378] sm:$0xff]
    %v911 = vld [vmem:[#allocation13 + $0x380] sm:$0xff]
    %v912 = vld [vmem:[#allocation13 + $0x388] sm:$0xff]
    %v913 = vld [vmem:[#allocation13 + $0x390] sm:$0xff]
    %v914 = vld [vmem:[#allocation13 + $0x398] sm:$0xff]
    %v915 = vld [vmem:[#allocation13 + $0x3a0] sm:$0xff]
    %v916 = vld [vmem:[#allocation13 + $0x3a8] sm:$0xff]
    %v917 = vld [vmem:[#allocation13 + $0x3b0] sm:$0xff]
    %v918 = vld [vmem:[#allocation13 + $0x3b8] sm:$0xff]
    %v919 = vld [vmem:[#allocation13 + $0x3c0] sm:$0xff]
    %v920 = vld [vmem:[#allocation13 + $0x3c8] sm:$0xff]
    %v921 = vld [vmem:[#allocation13 + $0x3d0] sm:$0xff]
    %v922 = vld [vmem:[#allocation13 + $0x3d8] sm:$0xff]
    %v923 = vld [vmem:[#allocation13 + $0x3e0] sm:$0xff]
    %v924 = vld [vmem:[#allocation13 + $0x3e8] sm:$0xff]
    %v925 = vld [vmem:[#allocation13 + $0x3f0] sm:$0xff]
    %v926 = vld [vmem:[#allocation13 + $0x3f8] sm:$0xff]
    %v927 = vld [vmem:[%s8] sm:$0xf]
    %v929 = vlaneseq
    %v930 = vshrl.u32 %v929, 7
    %v931 = vsub.s32 0, %v930
    %v932 = vrot.slane %v927, %v931
    %v933 = vlaneseq
    %v934 = vshrl.u32 %v933, 7
    %v935 = vsub.s32 1, %v934
    %v936 = vrot.slane %v927, %v935
    %v937 = vlaneseq
    %v938 = vshrl.u32 %v937, 7
    %v939 = vsub.s32 2, %v938
    %v940 = vrot.slane %v927, %v939
    %v941 = vlaneseq
    %v942 = vshrl.u32 %v941, 7
    %v943 = vsub.s32 3, %v942
    %v944 = vrot.slane %v927, %v943
    %v1077 = vunpack.c.l.b16 %v799
    %v1078 = vunpack.c.h.b16 %v799
    %v1079 = vunpack.c.l.b16 %v800
    %v1080 = vunpack.c.h.b16 %v800
    %v1081 = vunpack.c.l.b16 %v801
    %v1082 = vunpack.c.h.b16 %v801
    %v1083 = vunpack.c.l.b16 %v802
    %v1084 = vunpack.c.h.b16 %v802
    %v1085 = vunpack.c.l.b16 %v803
    %v1086 = vunpack.c.h.b16 %v803
    %v1087 = vunpack.c.l.b16 %v804
    %v1088 = vunpack.c.h.b16 %v804
    %v1089 = vunpack.c.l.b16 %v805
    %v1090 = vunpack.c.h.b16 %v805
    %v1091 = vunpack.c.l.b16 %v806
    %v1092 = vunpack.c.h.b16 %v806
    %v1093 = vunpack.c.l.b16 %v807
    %v1094 = vunpack.c.h.b16 %v807
    %v1095 = vunpack.c.l.b16 %v808
    %v1096 = vunpack.c.h.b16 %v808
    %v1097 = vunpack.c.l.b16 %v809
    %v1098 = vunpack.c.h.b16 %v809
    %v1099 = vunpack.c.l.b16 %v810
    %v1100 = vunpack.c.h.b16 %v810
    %v1101 = vunpack.c.l.b16 %v811
    %v1102 = vunpack.c.h.b16 %v811
    %v1103 = vunpack.c.l.b16 %v812
    %v1104 = vunpack.c.h.b16 %v812
    %v1105 = vunpack.c.l.b16 %v813
    %v1106 = vunpack.c.h.b16 %v813
    %v1107 = vunpack.c.l.b16 %v814
    %v1108 = vunpack.c.h.b16 %v814
    %v1109 = vunpack.c.l.b16 %v815
    %v1110 = vunpack.c.h.b16 %v815
    %v1111 = vunpack.c.l.b16 %v816
    %v1112 = vunpack.c.h.b16 %v816
    %v1113 = vunpack.c.l.b16 %v817
    %v1114 = vunpack.c.h.b16 %v817
    %v1115 = vunpack.c.l.b16 %v818
    %v1116 = vunpack.c.h.b16 %v818
    %v1117 = vunpack.c.l.b16 %v819
    %v1118 = vunpack.c.h.b16 %v819
    %v1119 = vunpack.c.l.b16 %v820
    %v1120 = vunpack.c.h.b16 %v820
    %v1121 = vunpack.c.l.b16 %v821
    %v1122 = vunpack.c.h.b16 %v821
    %v1123 = vunpack.c.l.b16 %v822
    %v1124 = vunpack.c.h.b16 %v822
    %v1125 = vunpack.c.l.b16 %v823
    %v1126 = vunpack.c.h.b16 %v823
    %v1127 = vunpack.c.l.b16 %v824
    %v1128 = vunpack.c.h.b16 %v824
    %v1129 = vunpack.c.l.b16 %v825
    %v1130 = vunpack.c.h.b16 %v825
    %v1131 = vunpack.c.l.b16 %v826
    %v1132 = vunpack.c.h.b16 %v826
    %v1133 = vunpack.c.l.b16 %v827
    %v1134 = vunpack.c.h.b16 %v827
    %v1135 = vunpack.c.l.b16 %v828
    %v1136 = vunpack.c.h.b16 %v828
    %v1137 = vunpack.c.l.b16 %v829
    %v1138 = vunpack.c.h.b16 %v829
    %v1139 = vunpack.c.l.b16 %v830
    %v1140 = vunpack.c.h.b16 %v830
    %v1141 = vunpack.c.l.b16 %v831
    %v1142 = vunpack.c.h.b16 %v831
    %v1143 = vunpack.c.l.b16 %v832
    %v1144 = vunpack.c.h.b16 %v832
    %v1145 = vunpack.c.l.b16 %v833
    %v1146 = vunpack.c.h.b16 %v833
    %v1147 = vunpack.c.l.b16 %v834
    %v1148 = vunpack.c.h.b16 %v834
    %v1149 = vunpack.c.l.b16 %v835
    %v1150 = vunpack.c.h.b16 %v835
    %v1151 = vunpack.c.l.b16 %v836
    %v1152 = vunpack.c.h.b16 %v836
    %v1153 = vunpack.c.l.b16 %v837
    %v1154 = vunpack.c.h.b16 %v837
    %v1155 = vunpack.c.l.b16 %v838
    %v1156 = vunpack.c.h.b16 %v838
    %v1157 = vunpack.c.l.b16 %v839
    %v1158 = vunpack.c.h.b16 %v839
    %v1159 = vunpack.c.l.b16 %v840
    %v1160 = vunpack.c.h.b16 %v840
    %v1161 = vunpack.c.l.b16 %v841
    %v1162 = vunpack.c.h.b16 %v841
    %v1163 = vunpack.c.l.b16 %v842
    %v1164 = vunpack.c.h.b16 %v842
    %v1165 = vunpack.c.l.b16 %v843
    %v1166 = vunpack.c.h.b16 %v843
    %v1167 = vunpack.c.l.b16 %v844
    %v1168 = vunpack.c.h.b16 %v844
    %v1169 = vunpack.c.l.b16 %v845
    %v1170 = vunpack.c.h.b16 %v845
    %v1171 = vunpack.c.l.b16 %v846
    %v1172 = vunpack.c.h.b16 %v846
    %v1173 = vunpack.c.l.b16 %v847
    %v1174 = vunpack.c.h.b16 %v847
    %v1175 = vunpack.c.l.b16 %v848
    %v1176 = vunpack.c.h.b16 %v848
    %v1177 = vunpack.c.l.b16 %v849
    %v1178 = vunpack.c.h.b16 %v849
    %v1179 = vunpack.c.l.b16 %v850
    %v1180 = vunpack.c.h.b16 %v850
    %v1181 = vunpack.c.l.b16 %v851
    %v1182 = vunpack.c.h.b16 %v851
    %v1183 = vunpack.c.l.b16 %v852
    %v1184 = vunpack.c.h.b16 %v852
    %v1185 = vunpack.c.l.b16 %v853
    %v1186 = vunpack.c.h.b16 %v853
    %v1187 = vunpack.c.l.b16 %v854
    %v1188 = vunpack.c.h.b16 %v854
    %v1189 = vunpack.c.l.b16 %v855
    %v1190 = vunpack.c.h.b16 %v855
    %v1191 = vunpack.c.l.b16 %v856
    %v1192 = vunpack.c.h.b16 %v856
    %v1193 = vunpack.c.l.b16 %v857
    %v1194 = vunpack.c.h.b16 %v857
    %v1195 = vunpack.c.l.b16 %v858
    %v1196 = vunpack.c.h.b16 %v858
    %v1197 = vunpack.c.l.b16 %v859
    %v1198 = vunpack.c.h.b16 %v859
    %v1199 = vunpack.c.l.b16 %v860
    %v1200 = vunpack.c.h.b16 %v860
    %v1201 = vunpack.c.l.b16 %v861
    %v1202 = vunpack.c.h.b16 %v861
    %v1203 = vunpack.c.l.b16 %v862
    %v1204 = vunpack.c.h.b16 %v862
    %v1205 = vunpack.c.l.b16 %v863
    %v1206 = vunpack.c.h.b16 %v863
    %v1207 = vunpack.c.l.b16 %v864
    %v1208 = vunpack.c.h.b16 %v864
    %v1209 = vunpack.c.l.b16 %v865
    %v1210 = vunpack.c.h.b16 %v865
    %v1211 = vunpack.c.l.b16 %v866
    %v1212 = vunpack.c.h.b16 %v866
    %v1213 = vunpack.c.l.b16 %v867
    %v1214 = vunpack.c.h.b16 %v867
    %v1215 = vunpack.c.l.b16 %v868
    %v1216 = vunpack.c.h.b16 %v868
    %v1217 = vunpack.c.l.b16 %v869
    %v1218 = vunpack.c.h.b16 %v869
    %v1219 = vunpack.c.l.b16 %v870
    %v1220 = vunpack.c.h.b16 %v870
    %v1221 = vunpack.c.l.b16 %v871
    %v1222 = vunpack.c.h.b16 %v871
    %v1223 = vunpack.c.l.b16 %v872
    %v1224 = vunpack.c.h.b16 %v872
    %v1225 = vunpack.c.l.b16 %v873
    %v1226 = vunpack.c.h.b16 %v873
    %v1227 = vunpack.c.l.b16 %v874
    %v1228 = vunpack.c.h.b16 %v874
    %v1229 = vunpack.c.l.b16 %v875
    %v1230 = vunpack.c.h.b16 %v875
    %v1231 = vunpack.c.l.b16 %v876
    %v1232 = vunpack.c.h.b16 %v876
    %v1233 = vunpack.c.l.b16 %v877
    %v1234 = vunpack.c.h.b16 %v877
    %v1235 = vunpack.c.l.b16 %v878
    %v1236 = vunpack.c.h.b16 %v878
    %v1237 = vunpack.c.l.b16 %v879
    %v1238 = vunpack.c.h.b16 %v879
    %v1239 = vunpack.c.l.b16 %v880
    %v1240 = vunpack.c.h.b16 %v880
    %v1241 = vunpack.c.l.b16 %v881
    %v1242 = vunpack.c.h.b16 %v881
    %v1243 = vunpack.c.l.b16 %v882
    %v1244 = vunpack.c.h.b16 %v882
    %v1245 = vunpack.c.l.b16 %v883
    %v1246 = vunpack.c.h.b16 %v883
    %v1247 = vunpack.c.l.b16 %v884
    %v1248 = vunpack.c.h.b16 %v884
    %v1249 = vunpack.c.l.b16 %v885
    %v1250 = vunpack.c.h.b16 %v885
    %v1251 = vunpack.c.l.b16 %v886
    %v1252 = vunpack.c.h.b16 %v886
    %v1253 = vunpack.c.l.b16 %v887
    %v1254 = vunpack.c.h.b16 %v887
    %v1255 = vunpack.c.l.b16 %v888
    %v1256 = vunpack.c.h.b16 %v888
    %v1257 = vunpack.c.l.b16 %v889
    %v1258 = vunpack.c.h.b16 %v889
    %v1259 = vunpack.c.l.b16 %v890
    %v1260 = vunpack.c.h.b16 %v890
    %v1261 = vunpack.c.l.b16 %v891
    %v1262 = vunpack.c.h.b16 %v891
    %v1263 = vunpack.c.l.b16 %v892
    %v1264 = vunpack.c.h.b16 %v892
    %v1265 = vunpack.c.l.b16 %v893
    %v1266 = vunpack.c.h.b16 %v893
    %v1267 = vunpack.c.l.b16 %v894
    %v1268 = vunpack.c.h.b16 %v894
    %v1269 = vunpack.c.l.b16 %v895
    %v1270 = vunpack.c.h.b16 %v895
    %v1271 = vunpack.c.l.b16 %v896
    %v1272 = vunpack.c.h.b16 %v896
    %v1273 = vunpack.c.l.b16 %v897
    %v1274 = vunpack.c.h.b16 %v897
    %v1275 = vunpack.c.l.b16 %v898
    %v1276 = vunpack.c.h.b16 %v898
    %v1277 = vunpack.c.l.b16 %v899
    %v1278 = vunpack.c.h.b16 %v899
    %v1279 = vunpack.c.l.b16 %v900
    %v1280 = vunpack.c.h.b16 %v900
    %v1281 = vunpack.c.l.b16 %v901
    %v1282 = vunpack.c.h.b16 %v901
    %v1283 = vunpack.c.l.b16 %v902
    %v1284 = vunpack.c.h.b16 %v902
    %v1285 = vunpack.c.l.b16 %v903
    %v1286 = vunpack.c.h.b16 %v903
    %v1287 = vunpack.c.l.b16 %v904
    %v1288 = vunpack.c.h.b16 %v904
    %v1289 = vunpack.c.l.b16 %v905
    %v1290 = vunpack.c.h.b16 %v905
    %v1291 = vunpack.c.l.b16 %v906
    %v1292 = vunpack.c.h.b16 %v906
    %v1293 = vunpack.c.l.b16 %v907
    %v1294 = vunpack.c.h.b16 %v907
    %v1295 = vunpack.c.l.b16 %v908
    %v1296 = vunpack.c.h.b16 %v908
    %v1297 = vunpack.c.l.b16 %v909
    %v1298 = vunpack.c.h.b16 %v909
    %v1299 = vunpack.c.l.b16 %v910
    %v1300 = vunpack.c.h.b16 %v910
    %v1301 = vunpack.c.l.b16 %v911
    %v1302 = vunpack.c.h.b16 %v911
    %v1303 = vunpack.c.l.b16 %v912
    %v1304 = vunpack.c.h.b16 %v912
    %v1305 = vunpack.c.l.b16 %v913
    %v1306 = vunpack.c.h.b16 %v913
    %v1307 = vunpack.c.l.b16 %v914
    %v1308 = vunpack.c.h.b16 %v914
    %v1309 = vunpack.c.l.b16 %v915
    %v1310 = vunpack.c.h.b16 %v915
    %v1311 = vunpack.c.l.b16 %v916
    %v1312 = vunpack.c.h.b16 %v916
    %v1313 = vunpack.c.l.b16 %v917
    %v1314 = vunpack.c.h.b16 %v917
    %v1315 = vunpack.c.l.b16 %v918
    %v1316 = vunpack.c.h.b16 %v918
    %v1317 = vunpack.c.l.b16 %v919
    %v1318 = vunpack.c.h.b16 %v919
    %v1319 = vunpack.c.l.b16 %v920
    %v1320 = vunpack.c.h.b16 %v920
    %v1321 = vunpack.c.l.b16 %v921
    %v1322 = vunpack.c.h.b16 %v921
    %v1323 = vunpack.c.l.b16 %v922
    %v1324 = vunpack.c.h.b16 %v922
    %v1325 = vunpack.c.l.b16 %v923
    %v1326 = vunpack.c.h.b16 %v923
    %v1327 = vunpack.c.l.b16 %v924
    %v1328 = vunpack.c.h.b16 %v924
    %v1329 = vunpack.c.l.b16 %v925
    %v1330 = vunpack.c.h.b16 %v925
    %v1331 = vunpack.c.l.b16 %v926
    %v1332 = vunpack.c.h.b16 %v926
    %v1333 = vpack.c.b16 %v1081, %v1077
    %v1334 = vpack.c.b16 %v1082, %v1078
    %v1335 = vpack.c.b16 %v1083, %v1079
    %v1336 = vpack.c.b16 %v1084, %v1080
    %v1337 = vpack.c.b16 %v1089, %v1085
    %v1338 = vpack.c.b16 %v1090, %v1086
    %v1339 = vpack.c.b16 %v1091, %v1087
    %v1340 = vpack.c.b16 %v1092, %v1088
    %v1341 = vpack.c.b16 %v1097, %v1093
    %v1342 = vpack.c.b16 %v1098, %v1094
    %v1343 = vpack.c.b16 %v1099, %v1095
    %v1344 = vpack.c.b16 %v1100, %v1096
    %v1345 = vpack.c.b16 %v1105, %v1101
    %v1346 = vpack.c.b16 %v1106, %v1102
    %v1347 = vpack.c.b16 %v1107, %v1103
    %v1348 = vpack.c.b16 %v1108, %v1104
    %v1349 = vpack.c.b16 %v1113, %v1109
    %v1350 = vpack.c.b16 %v1114, %v1110
    %v1351 = vpack.c.b16 %v1115, %v1111
    %v1352 = vpack.c.b16 %v1116, %v1112
    %v1353 = vpack.c.b16 %v1121, %v1117
    %v1354 = vpack.c.b16 %v1122, %v1118
    %v1355 = vpack.c.b16 %v1123, %v1119
    %v1356 = vpack.c.b16 %v1124, %v1120
    %v1357 = vpack.c.b16 %v1129, %v1125
    %v1358 = vpack.c.b16 %v1130, %v1126
    %v1359 = vpack.c.b16 %v1131, %v1127
    %v1360 = vpack.c.b16 %v1132, %v1128
    %v1361 = vpack.c.b16 %v1137, %v1133
    %v1362 = vpack.c.b16 %v1138, %v1134
    %v1363 = vpack.c.b16 %v1139, %v1135
    %v1364 = vpack.c.b16 %v1140, %v1136
    %v1365 = vpack.c.b16 %v1145, %v1141
    %v1366 = vpack.c.b16 %v1146, %v1142
    %v1367 = vpack.c.b16 %v1147, %v1143
    %v1368 = vpack.c.b16 %v1148, %v1144
    %v1369 = vpack.c.b16 %v1153, %v1149
    %v1370 = vpack.c.b16 %v1154, %v1150
    %v1371 = vpack.c.b16 %v1155, %v1151
    %v1372 = vpack.c.b16 %v1156, %v1152
    %v1373 = vpack.c.b16 %v1161, %v1157
    %v1374 = vpack.c.b16 %v1162, %v1158
    %v1375 = vpack.c.b16 %v1163, %v1159
    %v1376 = vpack.c.b16 %v1164, %v1160
    %v1377 = vpack.c.b16 %v1169, %v1165
    %v1378 = vpack.c.b16 %v1170, %v1166
    %v1379 = vpack.c.b16 %v1171, %v1167
    %v1380 = vpack.c.b16 %v1172, %v1168
    %v1381 = vpack.c.b16 %v1177, %v1173
    %v1382 = vpack.c.b16 %v1178, %v1174
    %v1383 = vpack.c.b16 %v1179, %v1175
    %v1384 = vpack.c.b16 %v1180, %v1176
    %v1385 = vpack.c.b16 %v1185, %v1181
    %v1386 = vpack.c.b16 %v1186, %v1182
    %v1387 = vpack.c.b16 %v1187, %v1183
    %v1388 = vpack.c.b16 %v1188, %v1184
    %v1389 = vpack.c.b16 %v1193, %v1189
    %v1390 = vpack.c.b16 %v1194, %v1190
    %v1391 = vpack.c.b16 %v1195, %v1191
    %v1392 = vpack.c.b16 %v1196, %v1192
    %v1393 = vpack.c.b16 %v1201, %v1197
    %v1394 = vpack.c.b16 %v1202, %v1198
    %v1395 = vpack.c.b16 %v1203, %v1199
    %v1396 = vpack.c.b16 %v1204, %v1200
    %v1397 = vpack.c.b16 %v1209, %v1205
    %v1398 = vpack.c.b16 %v1210, %v1206
    %v1399 = vpack.c.b16 %v1211, %v1207
    %v1400 = vpack.c.b16 %v1212, %v1208
    %v1401 = vpack.c.b16 %v1217, %v1213
    %v1402 = vpack.c.b16 %v1218, %v1214
    %v1403 = vpack.c.b16 %v1219, %v1215
    %v1404 = vpack.c.b16 %v1220, %v1216
    %v1405 = vpack.c.b16 %v1225, %v1221
    %v1406 = vpack.c.b16 %v1226, %v1222
    %v1407 = vpack.c.b16 %v1227, %v1223
    %v1408 = vpack.c.b16 %v1228, %v1224
    %v1409 = vpack.c.b16 %v1233, %v1229
    %v1410 = vpack.c.b16 %v1234, %v1230
    %v1411 = vpack.c.b16 %v1235, %v1231
    %v1412 = vpack.c.b16 %v1236, %v1232
    %v1413 = vpack.c.b16 %v1241, %v1237
    %v1414 = vpack.c.b16 %v1242, %v1238
    %v1415 = vpack.c.b16 %v1243, %v1239
    %v1416 = vpack.c.b16 %v1244, %v1240
    %v1417 = vpack.c.b16 %v1249, %v1245
    %v1418 = vpack.c.b16 %v1250, %v1246
    %v1419 = vpack.c.b16 %v1251, %v1247
    %v1420 = vpack.c.b16 %v1252, %v1248
    %v1421 = vpack.c.b16 %v1257, %v1253
    %v1422 = vpack.c.b16 %v1258, %v1254
    %v1423 = vpack.c.b16 %v1259, %v1255
    %v1424 = vpack.c.b16 %v1260, %v1256
    %v1425 = vpack.c.b16 %v1265, %v1261
    %v1426 = vpack.c.b16 %v1266, %v1262
    %v1427 = vpack.c.b16 %v1267, %v1263
    %v1428 = vpack.c.b16 %v1268, %v1264
    %v1429 = vpack.c.b16 %v1273, %v1269
    %v1430 = vpack.c.b16 %v1274, %v1270
    %v1431 = vpack.c.b16 %v1275, %v1271
    %v1432 = vpack.c.b16 %v1276, %v1272
    %v1433 = vpack.c.b16 %v1281, %v1277
    %v1434 = vpack.c.b16 %v1282, %v1278
    %v1435 = vpack.c.b16 %v1283, %v1279
    %v1436 = vpack.c.b16 %v1284, %v1280
    %v1437 = vpack.c.b16 %v1289, %v1285
    %v1438 = vpack.c.b16 %v1290, %v1286
    %v1439 = vpack.c.b16 %v1291, %v1287
    %v1440 = vpack.c.b16 %v1292, %v1288
    %v1441 = vpack.c.b16 %v1297, %v1293
    %v1442 = vpack.c.b16 %v1298, %v1294
    %v1443 = vpack.c.b16 %v1299, %v1295
    %v1444 = vpack.c.b16 %v1300, %v1296
    %v1445 = vpack.c.b16 %v1305, %v1301
    %v1446 = vpack.c.b16 %v1306, %v1302
    %v1447 = vpack.c.b16 %v1307, %v1303
    %v1448 = vpack.c.b16 %v1308, %v1304
    %v1449 = vpack.c.b16 %v1313, %v1309
    %v1450 = vpack.c.b16 %v1314, %v1310
    %v1451 = vpack.c.b16 %v1315, %v1311
    %v1452 = vpack.c.b16 %v1316, %v1312
    %v1453 = vpack.c.b16 %v1321, %v1317
    %v1454 = vpack.c.b16 %v1322, %v1318
    %v1455 = vpack.c.b16 %v1323, %v1319
    %v1456 = vpack.c.b16 %v1324, %v1320
    %v1457 = vpack.c.b16 %v1329, %v1325
    %v1458 = vpack.c.b16 %v1330, %v1326
    %v1459 = vpack.c.b16 %v1331, %v1327
    %v1460 = vpack.c.b16 %v1332, %v1328
    %1589 = vmatprep.subr.bf16.mxu0 %v1334
    %1590 = vmatpush1.bf16.msra.mxu0 %v1333
    %1591 = vmatprep.subr.bf16.mxu0 %v1338
    %1592 = vmatpush1.bf16.msra.mxu0 %v1337
    %1593 = vmatprep.subr.bf16.mxu0 %v1342
    %1594 = vmatpush1.bf16.msra.mxu0 %v1341
    %1595 = vmatprep.subr.bf16.mxu0 %v1346
    %1596 = vmatpush1.bf16.msra.mxu0 %v1345
    %1597 = vmatprep.subr.bf16.mxu0 %v1350
    %1598 = vmatpush1.bf16.msra.mxu0 %v1349
    %1599 = vmatprep.subr.bf16.mxu0 %v1354
    %1600 = vmatpush1.bf16.msra.mxu0 %v1353
    %1601 = vmatprep.subr.bf16.mxu0 %v1358
    %1602 = vmatpush1.bf16.msra.mxu0 %v1357
    %1603 = vmatprep.subr.bf16.mxu0 %v1362
    %1604 = vmatpush1.bf16.msra.mxu0 %v1361
    %1605 = vmatprep.subr.bf16.mxu0 %v1366
    %1606 = vmatpush1.bf16.msra.mxu0 %v1365
    %1607 = vmatprep.subr.bf16.mxu0 %v1370
    %1608 = vmatpush1.bf16.msra.mxu0 %v1369
    %1609 = vmatprep.subr.bf16.mxu0 %v1374
    %1610 = vmatpush1.bf16.msra.mxu0 %v1373
    %1611 = vmatprep.subr.bf16.mxu0 %v1378
    %1612 = vmatpush1.bf16.msra.mxu0 %v1377
    %1613 = vmatprep.subr.bf16.mxu0 %v1382
    %1614 = vmatpush1.bf16.msra.mxu0 %v1381
    %1615 = vmatprep.subr.bf16.mxu0 %v1386
    %1616 = vmatpush1.bf16.msra.mxu0 %v1385
    %1617 = vmatprep.subr.bf16.mxu0 %v1390
    %1618 = vmatpush1.bf16.msra.mxu0 %v1389
    %1619 = vmatprep.subr.bf16.mxu0 %v1394
    %1620 = vmatpush1.bf16.msra.mxu0 %v1393
    %1621 = vmatprep.mubr.bf16.mxu0 %v796
    %1622 = vmatmul.mubr.bf16.gmra.mrb[0].mxu0 %v795
    %v1623 = vpop.f32.mrb[0].mxu0
    %v1624 = vadd.f32 %v932, %v1623
    %v1625 = vpop.f32.mrb[0].mxu0
    %v1626 = vadd.f32 %v936, %v1625
    %v1627 = vpop.f32.mrb[0].mxu0
    %v1628 = vpop.f32.mrb[0].mxu0
    %1629 = vdwg.mxu0
    %1630 = vmatprep.subr.bf16.mxu0 %v1398
    %1631 = vmatpush1.bf16.msra.mxu0 %v1397
    %1632 = vmatprep.subr.bf16.mxu0 %v1402
    %1633 = vmatpush1.bf16.msra.mxu0 %v1401
    %1634 = vmatprep.subr.bf16.mxu0 %v1406
    %1635 = vmatpush1.bf16.msra.mxu0 %v1405
    %1636 = vmatprep.subr.bf16.mxu0 %v1410
    %1637 = vmatpush1.bf16.msra.mxu0 %v1409
    %1638 = vmatprep.subr.bf16.mxu0 %v1414
    %1639 = vmatpush1.bf16.msra.mxu0 %v1413
    %1640 = vmatprep.subr.bf16.mxu0 %v1418
    %1641 = vmatpush1.bf16.msra.mxu0 %v1417
    %1642 = vmatprep.subr.bf16.mxu0 %v1422
    %1643 = vmatpush1.bf16.msra.mxu0 %v1421
    %1644 = vmatprep.subr.bf16.mxu0 %v1426
    %1645 = vmatpush1.bf16.msra.mxu0 %v1425
    %1646 = vmatprep.subr.bf16.mxu0 %v1430
    %1647 = vmatpush1.bf16.msra.mxu0 %v1429
    %1648 = vmatprep.subr.bf16.mxu0 %v1434
    %1649 = vmatpush1.bf16.msra.mxu0 %v1433
    %1650 = vmatprep.subr.bf16.mxu0 %v1438
    %1651 = vmatpush1.bf16.msra.mxu0 %v1437
    %1652 = vmatprep.subr.bf16.mxu0 %v1442
    %1653 = vmatpush1.bf16.msra.mxu0 %v1441
    %1654 = vmatprep.subr.bf16.mxu0 %v1446
    %1655 = vmatpush1.bf16.msra.mxu0 %v1445
    %1656 = vmatprep.subr.bf16.mxu0 %v1450
    %1657 = vmatpush1.bf16.msra.mxu0 %v1449
    %1658 = vmatprep.subr.bf16.mxu0 %v1454
    %1659 = vmatpush1.bf16.msra.mxu0 %v1453
    %1660 = vmatprep.subr.bf16.mxu0 %v1458
    %1661 = vmatpush1.bf16.msra.mxu0 %v1457
    %1662 = vmatprep.mubr.bf16.mxu0 %v798
    %1663 = vmatmul.mubr.bf16.gmra.mrb[0].mxu0 %v797
    %v1664 = vpop.f32.mrb[0].mxu0
    %v1665 = vadd.f32 %v1624, %v1664
    %v1666 = vpop.f32.mrb[0].mxu0
    %v1667 = vadd.f32 %v1626, %v1666
    %v1668 = vpop.f32.mrb[0].mxu0
    %v1669 = vpop.f32.mrb[0].mxu0
    %1670 = vdwg.mxu0
    %1671 = vmatprep.subr.bf16.mxu0 %v1336
    %1672 = vmatpush1.bf16.msra.mxu0 %v1335
    %1673 = vmatprep.subr.bf16.mxu0 %v1340
    %1674 = vmatpush1.bf16.msra.mxu0 %v1339
    %1675 = vmatprep.subr.bf16.mxu0 %v1344
    %1676 = vmatpush1.bf16.msra.mxu0 %v1343
    %1677 = vmatprep.subr.bf16.mxu0 %v1348
    %1678 = vmatpush1.bf16.msra.mxu0 %v1347
    %1679 = vmatprep.subr.bf16.mxu0 %v1352
    %1680 = vmatpush1.bf16.msra.mxu0 %v1351
    %1681 = vmatprep.subr.bf16.mxu0 %v1356
    %1682 = vmatpush1.bf16.msra.mxu0 %v1355
    %1683 = vmatprep.subr.bf16.mxu0 %v1360
    %1684 = vmatpush1.bf16.msra.mxu0 %v1359
    %1685 = vmatprep.subr.bf16.mxu0 %v1364
    %1686 = vmatpush1.bf16.msra.mxu0 %v1363
    %1687 = vmatprep.subr.bf16.mxu0 %v1368
    %1688 = vmatpush1.bf16.msra.mxu0 %v1367
    %1689 = vmatprep.subr.bf16.mxu0 %v1372
    %1690 = vmatpush1.bf16.msra.mxu0 %v1371
    %1691 = vmatprep.subr.bf16.mxu0 %v1376
    %1692 = vmatpush1.bf16.msra.mxu0 %v1375
    %1693 = vmatprep.subr.bf16.mxu0 %v1380
    %1694 = vmatpush1.bf16.msra.mxu0 %v1379
    %1695 = vmatprep.subr.bf16.mxu0 %v1384
    %1696 = vmatpush1.bf16.msra.mxu0 %v1383
    %1697 = vmatprep.subr.bf16.mxu0 %v1388
    %1698 = vmatpush1.bf16.msra.mxu0 %v1387
    %1699 = vmatprep.subr.bf16.mxu0 %v1392
    %1700 = vmatpush1.bf16.msra.mxu0 %v1391
    %1701 = vmatprep.subr.bf16.mxu0 %v1396
    %1702 = vmatpush1.bf16.msra.mxu0 %v1395
    %1703 = vmatprep.mubr.bf16.mxu0 %v796
    %1704 = vmatmul.mubr.bf16.gmra.mrb[0].mxu0 %v795
    %v1705 = vpop.f32.mrb[0].mxu0
    %v1706 = vadd.f32 %v940, %v1705
    %v1707 = vpop.f32.mrb[0].mxu0
    %v1708 = vadd.f32 %v944, %v1707
    %v1709 = vpop.f32.mrb[0].mxu0
    %v1710 = vpop.f32.mrb[0].mxu0
    %1711 = vdwg.mxu0
    %1712 = vmatprep.subr.bf16.mxu0 %v1400
    %1713 = vmatpush1.bf16.msra.mxu0 %v1399
    %1714 = vmatprep.subr.bf16.mxu0 %v1404
    %1715 = vmatpush1.bf16.msra.mxu0 %v1403
    %1716 = vmatprep.subr.bf16.mxu0 %v1408
    %1717 = vmatpush1.bf16.msra.mxu0 %v1407
    %1718 = vmatprep.subr.bf16.mxu0 %v1412
    %1719 = vmatpush1.bf16.msra.mxu0 %v1411
    %1720 = vmatprep.subr.bf16.mxu0 %v1416
    %1721 = vmatpush1.bf16.msra.mxu0 %v1415
    %1722 = vmatprep.subr.bf16.mxu0 %v1420
    %1723 = vmatpush1.bf16.msra.mxu0 %v1419
    %1724 = vmatprep.subr.bf16.mxu0 %v1424
    %1725 = vmatpush1.bf16.msra.mxu0 %v1423
    %1726 = vmatprep.subr.bf16.mxu0 %v1428
    %1727 = vmatpush1.bf16.msra.mxu0 %v1427
    %1728 = vmatprep.subr.bf16.mxu0 %v1432
    %1729 = vmatpush1.bf16.msra.mxu0 %v1431
    %1730 = vmatprep.subr.bf16.mxu0 %v1436
    %1731 = vmatpush1.bf16.msra.mxu0 %v1435
    %1732 = vmatprep.subr.bf16.mxu0 %v1440
    %1733 = vmatpush1.bf16.msra.mxu0 %v1439
    %1734 = vmatprep.subr.bf16.mxu0 %v1444
    %1735 = vmatpush1.bf16.msra.mxu0 %v1443
    %1736 = vmatprep.subr.bf16.mxu0 %v1448
    %1737 = vmatpush1.bf16.msra.mxu0 %v1447
    %1738 = vmatprep.subr.bf16.mxu0 %v1452
    %1739 = vmatpush1.bf16.msra.mxu0 %v1451
    %1740 = vmatprep.subr.bf16.mxu0 %v1456
    %1741 = vmatpush1.bf16.msra.mxu0 %v1455
    %1742 = vmatprep.subr.bf16.mxu0 %v1460
    %1743 = vmatpush1.bf16.msra.mxu0 %v1459
    %1744 = vmatprep.mubr.bf16.mxu0 %v798
    %1745 = vmatmul.mubr.bf16.gmra.mrb[0].mxu0 %v797
    %v1746 = vpop.f32.mrb[0].mxu0
    %v1747 = vadd.f32 %v1706, %v1746
    %v1748 = vpop.f32.mrb[0].mxu0
    %v1749 = vadd.f32 %v1708, %v1748
    %v1750 = vpop.f32.mrb[0].mxu0
    %v1751 = vpop.f32.mrb[0].mxu0
    %1752 = vdwg.mxu0
    %v1753 = vpack.c.bf16 %v1665, %v1665
    %v1754 = vpack.c.bf16 %v1667, %v1667
    %v1755 = vpack.c.bf16 %v1747, %v1747
    %v1756 = vpack.c.bf16 %v1749, %v1749
    %v1757 = vld [vmem:[#allocation14] sm:$0xf]
    %v1758 = vld [vmem:[#allocation14 + $0x4] sm:$0xf]
    %v1759 = vld [vmem:[#allocation14 + $0x8] sm:$0xf]
    %v1760 = vld [vmem:[#allocation14 + $0xc] sm:$0xf]
    %v1761 = vld [vmem:[#allocation14 + $0x10] sm:$0xf]
    %v1762 = vld [vmem:[#allocation14 + $0x14] sm:$0xf]
    %v1763 = vld [vmem:[#allocation14 + $0x18] sm:$0xf]
    %v1764 = vld [vmem:[#allocation14 + $0x1c] sm:$0xf]
    %v1765 = vld [vmem:[#allocation14 + $0x20] sm:$0xf]
    %v1766 = vld [vmem:[#allocation14 + $0x24] sm:$0xf]
    %v1767 = vld [vmem:[#allocation14 + $0x28] sm:$0xf]
    %v1768 = vld [vmem:[#allocation14 + $0x2c] sm:$0xf]
    %v1769 = vld [vmem:[#allocation14 + $0x30] sm:$0xf]
    %v1770 = vld [vmem:[#allocation14 + $0x34] sm:$0xf]
    %v1771 = vld [vmem:[#allocation14 + $0x38] sm:$0xf]
    %v1772 = vld [vmem:[#allocation14 + $0x3c] sm:$0xf]
    %v1773 = vld [vmem:[#allocation14 + $0x40] sm:$0xf]
    %v1774 = vld [vmem:[#allocation14 + $0x44] sm:$0xf]
    %v1775 = vld [vmem:[#allocation14 + $0x48] sm:$0xf]
    %v1776 = vld [vmem:[#allocation14 + $0x4c] sm:$0xf]
    %v1777 = vld [vmem:[#allocation14 + $0x50] sm:$0xf]
    %v1778 = vld [vmem:[#allocation14 + $0x54] sm:$0xf]
    %v1779 = vld [vmem:[#allocation14 + $0x58] sm:$0xf]
    %v1780 = vld [vmem:[#allocation14 + $0x5c] sm:$0xf]
    %v1781 = vld [vmem:[#allocation14 + $0x60] sm:$0xf]
    %v1782 = vld [vmem:[#allocation14 + $0x64] sm:$0xf]
    %v1783 = vld [vmem:[#allocation14 + $0x68] sm:$0xf]
    %v1784 = vld [vmem:[#allocation14 + $0x6c] sm:$0xf]
    %v1785 = vld [vmem:[#allocation14 + $0x70] sm:$0xf]
    %v1786 = vld [vmem:[#allocation14 + $0x74] sm:$0xf]
    %v1787 = vld [vmem:[#allocation14 + $0x78] sm:$0xf]
    %v1788 = vld [vmem:[#allocation14 + $0x7c] sm:$0xf]
    %v1789 = vld [vmem:[#allocation14 + $0x80] sm:$0xf]
    %v1790 = vld [vmem:[#allocation14 + $0x84] sm:$0xf]
    %v1791 = vld [vmem:[#allocation14 + $0x88] sm:$0xf]
    %v1792 = vld [vmem:[#allocation14 + $0x8c] sm:$0xf]
    %v1793 = vld [vmem:[#allocation14 + $0x90] sm:$0xf]
    %v1794 = vld [vmem:[#allocation14 + $0x94] sm:$0xf]
    %v1795 = vld [vmem:[#allocation14 + $0x98] sm:$0xf]
    %v1796 = vld [vmem:[#allocation14 + $0x9c] sm:$0xf]
    %v1797 = vld [vmem:[#allocation14 + $0xa0] sm:$0xf]
    %v1798 = vld [vmem:[#allocation14 + $0xa4] sm:$0xf]
    %v1799 = vld [vmem:[#allocation14 + $0xa8] sm:$0xf]
    %v1800 = vld [vmem:[#allocation14 + $0xac] sm:$0xf]
    %v1801 = vld [vmem:[#allocation14 + $0xb0] sm:$0xf]
    %v1802 = vld [vmem:[#allocation14 + $0xb4] sm:$0xf]
    %v1803 = vld [vmem:[#allocation14 + $0xb8] sm:$0xf]
    %v1804 = vld [vmem:[#allocation14 + $0xbc] sm:$0xf]
    %v1805 = vld [vmem:[#allocation14 + $0xc0] sm:$0xf]
    %v1806 = vld [vmem:[#allocation14 + $0xc4] sm:$0xf]
    %v1807 = vld [vmem:[#allocation14 + $0xc8] sm:$0xf]
    %v1808 = vld [vmem:[#allocation14 + $0xcc] sm:$0xf]
    %v1809 = vld [vmem:[#allocation14 + $0xd0] sm:$0xf]
    %v1810 = vld [vmem:[#allocation14 + $0xd4] sm:$0xf]
    %v1811 = vld [vmem:[#allocation14 + $0xd8] sm:$0xf]
    %v1812 = vld [vmem:[#allocation14 + $0xdc] sm:$0xf]
    %v1813 = vld [vmem:[#allocation14 + $0xe0] sm:$0xf]
    %v1814 = vld [vmem:[#allocation14 + $0xe4] sm:$0xf]
    %v1815 = vld [vmem:[#allocation14 + $0xe8] sm:$0xf]
    %v1816 = vld [vmem:[#allocation14 + $0xec] sm:$0xf]
    %v1817 = vld [vmem:[#allocation14 + $0xf0] sm:$0xf]
    %v1818 = vld [vmem:[#allocation14 + $0xf4] sm:$0xf]
    %v1819 = vld [vmem:[#allocation14 + $0xf8] sm:$0xf]
    %v1820 = vld [vmem:[#allocation14 + $0xfc] sm:$0xf]
    %v1821 = vld [vmem:[%s10] sm:$0x1]
    %v1823 = vlaneseq
    %v1824 = vshrl.u32 %v1823, 7
    %v1825 = vsub.s32 0, %v1824
    %v1826 = vrot.slane %v1821, %v1825
    %v1892 = vunpack.c.l.b16 %v1757
    %v1893 = vunpack.c.l.b16 %v1758
    %v1894 = vunpack.c.l.b16 %v1759
    %v1895 = vunpack.c.l.b16 %v1760
    %v1896 = vunpack.c.l.b16 %v1761
    %v1897 = vunpack.c.l.b16 %v1762
    %v1898 = vunpack.c.l.b16 %v1763
    %v1899 = vunpack.c.l.b16 %v1764
    %v1900 = vunpack.c.l.b16 %v1765
    %v1901 = vunpack.c.l.b16 %v1766
    %v1902 = vunpack.c.l.b16 %v1767
    %v1903 = vunpack.c.l.b16 %v1768
    %v1904 = vunpack.c.l.b16 %v1769
    %v1905 = vunpack.c.l.b16 %v1770
    %v1906 = vunpack.c.l.b16 %v1771
    %v1907 = vunpack.c.l.b16 %v1772
    %v1908 = vunpack.c.l.b16 %v1773
    %v1909 = vunpack.c.l.b16 %v1774
    %v1910 = vunpack.c.l.b16 %v1775
    %v1911 = vunpack.c.l.b16 %v1776
    %v1912 = vunpack.c.l.b16 %v1777
    %v1913 = vunpack.c.l.b16 %v1778
    %v1914 = vunpack.c.l.b16 %v1779
    %v1915 = vunpack.c.l.b16 %v1780
    %v1916 = vunpack.c.l.b16 %v1781
    %v1917 = vunpack.c.l.b16 %v1782
    %v1918 = vunpack.c.l.b16 %v1783
    %v1919 = vunpack.c.l.b16 %v1784
    %v1920 = vunpack.c.l.b16 %v1785
    %v1921 = vunpack.c.l.b16 %v1786
    %v1922 = vunpack.c.l.b16 %v1787
    %v1923 = vunpack.c.l.b16 %v1788
    %v1924 = vunpack.c.l.b16 %v1789
    %v1925 = vunpack.c.l.b16 %v1790
    %v1926 = vunpack.c.l.b16 %v1791
    %v1927 = vunpack.c.l.b16 %v1792
    %v1928 = vunpack.c.l.b16 %v1793
    %v1929 = vunpack.c.l.b16 %v1794
    %v1930 = vunpack.c.l.b16 %v1795
    %v1931 = vunpack.c.l.b16 %v1796
    %v1932 = vunpack.c.l.b16 %v1797
    %v1933 = vunpack.c.l.b16 %v1798
    %v1934 = vunpack.c.l.b16 %v1799
    %v1935 = vunpack.c.l.b16 %v1800
    %v1936 = vunpack.c.l.b16 %v1801
    %v1937 = vunpack.c.l.b16 %v1802
    %v1938 = vunpack.c.l.b16 %v1803
    %v1939 = vunpack.c.l.b16 %v1804
    %v1940 = vunpack.c.l.b16 %v1805
    %v1941 = vunpack.c.l.b16 %v1806
    %v1942 = vunpack.c.l.b16 %v1807
    %v1943 = vunpack.c.l.b16 %v1808
    %v1944 = vunpack.c.l.b16 %v1809
    %v1945 = vunpack.c.l.b16 %v1810
    %v1946 = vunpack.c.l.b16 %v1811
    %v1947 = vunpack.c.l.b16 %v1812
    %v1948 = vunpack.c.l.b16 %v1813
    %v1949 = vunpack.c.l.b16 %v1814
    %v1950 = vunpack.c.l.b16 %v1815
    %v1951 = vunpack.c.l.b16 %v1816
    %v1952 = vunpack.c.l.b16 %v1817
    %v1953 = vunpack.c.l.b16 %v1818
    %v1954 = vunpack.c.l.b16 %v1819
    %v1955 = vunpack.c.l.b16 %v1820
    %v1956 = vpack.c.b16 %v1893, %v1892
    %v1957 = vpack.c.b16 %v1895, %v1894
    %v1958 = vpack.c.b16 %v1897, %v1896
    %v1959 = vpack.c.b16 %v1899, %v1898
    %v1960 = vpack.c.b16 %v1901, %v1900
    %v1961 = vpack.c.b16 %v1903, %v1902
    %v1962 = vpack.c.b16 %v1905, %v1904
    %v1963 = vpack.c.b16 %v1907, %v1906
    %v1964 = vpack.c.b16 %v1909, %v1908
    %v1965 = vpack.c.b16 %v1911, %v1910
    %v1966 = vpack.c.b16 %v1913, %v1912
    %v1967 = vpack.c.b16 %v1915, %v1914
    %v1968 = vpack.c.b16 %v1917, %v1916
    %v1969 = vpack.c.b16 %v1919, %v1918
    %v1970 = vpack.c.b16 %v1921, %v1920
    %v1971 = vpack.c.b16 %v1923, %v1922
    %v1972 = vpack.c.b16 %v1925, %v1924
    %v1973 = vpack.c.b16 %v1927, %v1926
    %v1974 = vpack.c.b16 %v1929, %v1928
    %v1975 = vpack.c.b16 %v1931, %v1930
    %v1976 = vpack.c.b16 %v1933, %v1932
    %v1977 = vpack.c.b16 %v1935, %v1934
    %v1978 = vpack.c.b16 %v1937, %v1936
    %v1979 = vpack.c.b16 %v1939, %v1938
    %v1980 = vpack.c.b16 %v1941, %v1940
    %v1981 = vpack.c.b16 %v1943, %v1942
    %v1982 = vpack.c.b16 %v1945, %v1944
    %v1983 = vpack.c.b16 %v1947, %v1946
    %v1984 = vpack.c.b16 %v1949, %v1948
    %v1985 = vpack.c.b16 %v1951, %v1950
    %v1986 = vpack.c.b16 %v1953, %v1952
    %v1987 = vpack.c.b16 %v1955, %v1954
    %2020 = vmatprep.subr.bf16.mxu0 0
    %2021 = vmatpush1.bf16.msra.mxu0 %v1956
    %2022 = vmatprep.subr.bf16.mxu0 0
    %2023 = vmatpush1.bf16.msra.mxu0 %v1957
    %2024 = vmatprep.subr.bf16.mxu0 0
    %2025 = vmatpush1.bf16.msra.mxu0 %v1958
    %2026 = vmatprep.subr.bf16.mxu0 0
    %2027 = vmatpush1.bf16.msra.mxu0 %v1959
    %2028 = vmatprep.subr.bf16.mxu0 0
    %2029 = vmatpush1.bf16.msra.mxu0 %v1960
    %2030 = vmatprep.subr.bf16.mxu0 0
    %2031 = vmatpush1.bf16.msra.mxu0 %v1961
    %2032 = vmatprep.subr.bf16.mxu0 0
    %2033 = vmatpush1.bf16.msra.mxu0 %v1962
    %2034 = vmatprep.subr.bf16.mxu0 0
    %2035 = vmatpush1.bf16.msra.mxu0 %v1963
    %2036 = vmatprep.subr.bf16.mxu0 0
    %2037 = vmatpush1.bf16.msra.mxu0 %v1964
    %2038 = vmatprep.subr.bf16.mxu0 0
    %2039 = vmatpush1.bf16.msra.mxu0 %v1965
    %2040 = vmatprep.subr.bf16.mxu0 0
    %2041 = vmatpush1.bf16.msra.mxu0 %v1966
    %2042 = vmatprep.subr.bf16.mxu0 0
    %2043 = vmatpush1.bf16.msra.mxu0 %v1967
    %2044 = vmatprep.subr.bf16.mxu0 0
    %2045 = vmatpush1.bf16.msra.mxu0 %v1968
    %2046 = vmatprep.subr.bf16.mxu0 0
    %2047 = vmatpush1.bf16.msra.mxu0 %v1969
    %2048 = vmatprep.subr.bf16.mxu0 0
    %2049 = vmatpush1.bf16.msra.mxu0 %v1970
    %2050 = vmatprep.subr.bf16.mxu0 0
    %2051 = vmatpush1.bf16.msra.mxu0 %v1971
    %2052 = vmatprep.mubr.bf16.mxu0 %v1754
    %2053 = vmatmul.mubr.bf16.gmra.mrb[0].mxu0 %v1753
    %v2054 = vpop.f32.mrb[0].mxu0
    %v2055 = vadd.f32 %v1826, %v2054
    %v2056 = vpop.f32.mrb[0].mxu0
    %v2057 = vpop.f32.mrb[0].mxu0
    %v2058 = vpop.f32.mrb[0].mxu0
    %2059 = vdwg.mxu0
    %2060 = vmatprep.subr.bf16.mxu0 0
    %2061 = vmatpush1.bf16.msra.mxu0 %v1972
    %2062 = vmatprep.subr.bf16.mxu0 0
    %2063 = vmatpush1.bf16.msra.mxu0 %v1973
    %2064 = vmatprep.subr.bf16.mxu0 0
    %2065 = vmatpush1.bf16.msra.mxu0 %v1974
    %2066 = vmatprep.subr.bf16.mxu0 0
    %2067 = vmatpush1.bf16.msra.mxu0 %v1975
    %2068 = vmatprep.subr.bf16.mxu0 0
    %2069 = vmatpush1.bf16.msra.mxu0 %v1976
    %2070 = vmatprep.subr.bf16.mxu0 0
    %2071 = vmatpush1.bf16.msra.mxu0 %v1977
    %2072 = vmatprep.subr.bf16.mxu0 0
    %2073 = vmatpush1.bf16.msra.mxu0 %v1978
    %2074 = vmatprep.subr.bf16.mxu0 0
    %2075 = vmatpush1.bf16.msra.mxu0 %v1979
    %2076 = vmatprep.subr.bf16.mxu0 0
    %2077 = vmatpush1.bf16.msra.mxu0 %v1980
    %2078 = vmatprep.subr.bf16.mxu0 0
    %2079 = vmatpush1.bf16.msra.mxu0 %v1981
    %2080 = vmatprep.subr.bf16.mxu0 0
    %2081 = vmatpush1.bf16.msra.mxu0 %v1982
    %2082 = vmatprep.subr.bf16.mxu0 0
    %2083 = vmatpush1.bf16.msra.mxu0 %v1983
    %2084 = vmatprep.subr.bf16.mxu0 0
    %2085 = vmatpush1.bf16.msra.mxu0 %v1984
    %2086 = vmatprep.subr.bf16.mxu0 0
    %2087 = vmatpush1.bf16.msra.mxu0 %v1985
    %2088 = vmatprep.subr.bf16.mxu0 0
    %2089 = vmatpush1.bf16.msra.mxu0 %v1986
    %2090 = vmatprep.subr.bf16.mxu0 0
    %2091 = vmatpush1.bf16.msra.mxu0 %v1987
    %2092 = vmatprep.mubr.bf16.mxu0 %v1756
    %2093 = vmatmul.mubr.bf16.gmra.mrb[0].mxu0 %v1755
    %v2094 = vpop.f32.mrb[0].mxu0
    %v2095 = vadd.f32 %v2055, %v2094
    %v2096 = vpop.f32.mrb[0].mxu0
    %v2097 = vpop.f32.mrb[0].mxu0
    %v2098 = vpop.f32.mrb[0].mxu0
    %2099 = vdwg.mxu0
    %v2100 = vpack.c.bf16 %v2095, %v2095
    %2101 = vst [vmem:[#allocation16] sm:$0x1] %v2100
    // Predicated region
    $region78: #{tpu_custom_call.1} parent=1 // pred_check
      _
    $region79: #{tpu_custom_call.1} parent=1 // pred_check_branch
      %2103 = sbr.rel (0) target = $region81
    $region80: #{tpu_custom_call.1} parent=1 // pred_region
      %s2105 = ssub.s32 16, 16
      %2106 = vsyncadd [#allocation4], %s2105
      %s2108 = sshll.u32 [#allocation16], 4
      %s2109 = int_to_ptr.vmem [resolvable:$true] %s2108
      %2111 = dma.vmem_to_hbm [thread:$0]  %s2109, 16, %s11, [#allocation4]
    $region81: #{tpu_custom_call.1} parent=1 // pred_fallthru
      _
    // Predicated region
    $region82: #{tpu_custom_call.1} parent=1 // pred_check
      _
    $region83: #{tpu_custom_call.1} parent=1 // pred_check_branch
      %2113 = sbr.rel (0) target = $region85
    $region84: #{tpu_custom_call.1} parent=1 // pred_region
      %2114 = dma.done [#allocation4], 16
    $region85: #{tpu_custom_call.1} parent=1 // pred_fallthru
      _
    %2115 = vsyncpa [#allocation3], 1
    %2116 = vsyncpa [#allocation6], 1
    %2117 = vsyncpa [#allocation9], 1
    %2118 = vsyncpa [#allocation12], 1
    %2119 = vsyncpa [#allocation15], 1
    %2120 = vsyncpa [#allocation4], 1

</llo_original>
